<compile_context>
chip_gen: v7x
topology: tpu7x:2x2x1
jax: 0.10.0
libtpu: 0.0.40
codegen_flags: <defaults>
</compile_context>

<pallas_src>
import numpy as np
import jax
import jax.numpy as jnp
from jax import lax
from jax.experimental import pallas as pl
from jax.experimental.pallas import tpu as pltpu


# ------------------------------ Pallas kernel -------------------------------

def _attn_head_kernel(x_ref, wm_ref, wr_ref, cos_ref, sin_ref, bp_ref,
                      o_ref, acc_ref):
    # One (batch b, head h) grid step.
    # x_ref:   (1, N, C) f32   activations for batch b
    # wm_ref:  (1, C, W) bf16  per-head [ Wq_h*scale | Wk_h | Wv_h @ Wproj_h ], W=2D+C
    # wr_ref:  (1, C, W) bf16  per-head [ (Wq_h@R)*scale | Wk_h@R | 0 ]
    # cos_ref: (N, W)    f32   [ cos | cos | ones  ]  (shared across heads)
    # sin_ref: (N, W)    f32   [ sin | sin | zeros ]
    # bp_ref:  (1, C)    f32   output-projection bias
    # o_ref:   (1, N, C) f32   final output for batch b
    # acc_ref: (N, C)    f32   VMEM scratch, accumulated over the head axis
    N = x_ref.shape[1]
    C = x_ref.shape[2]
    W = wm_ref.shape[2]
    D = (W - C) // 2

    h = pl.program_id(1)

    @pl.when(h == 0)
    def _init():
        acc_ref[...] = jnp.zeros_like(acc_ref)

    x = x_ref[0].astype(jnp.bfloat16)                                    # (N, C)
    y = jnp.dot(x, wm_ref[0], preferred_element_type=jnp.float32)        # (N, W)
    yr = jnp.dot(x, wr_ref[0], preferred_element_type=jnp.float32)       # (N, W)
    # RoPE (rotate_half pre-folded into wr) applied lane-dense on the whole slab.
    qkv = y * cos_ref[...] + yr * sin_ref[...]                           # (N, W)

    q = qkv[:, :D].astype(jnp.bfloat16)                                  # (N, D)
    k = qkv[:, D:2 * D].astype(jnp.bfloat16)                             # (N, D)
    vw = qkv[:, 2 * D:].astype(jnp.bfloat16)                             # (N, C) = v_h @ Wproj_h

    # Scores; attention scale already folded into the q weight columns.
    s = lax.dot_general(q, k, dimension_numbers=(((1,), (1,)), ((), ())),
                        preferred_element_type=jnp.float32)              # (N, N)
    # Causal mask rebuilt in-register per step (no (N,N) mask buffer or DMA).
    row = lax.broadcasted_iota(jnp.int32, (N, N), 0)
    col = lax.broadcasted_iota(jnp.int32, (N, N), 1)
    s = jnp.where(col <= row, s, -1e30)

    m = jnp.max(s, axis=-1, keepdims=True)
    p = jnp.exp(s - m)
    l = jnp.sum(p, axis=-1, keepdims=True)
    # PV matmul with the output projection folded into vw: (N,N) x (N,C).
    contrib = jnp.dot(p.astype(jnp.bfloat16), vw,
                      preferred_element_type=jnp.float32)                # (N, C)
    acc_ref[...] += contrib * pl.reciprocal(l, approx=True)

    @pl.when(h == pl.num_programs(1) - 1)
    def _finalize():
        o_ref[0] = (acc_ref[...] + bp_ref[...]).astype(o_ref.dtype)


def attention_forward(x, params, num_heads):
    """Fused Pallas forward: qkv proj + rope + causal SDPA + output proj (+bias)."""
    B, N, C = x.shape
    W = params["w_main"].shape[2]
    return pl.pallas_call(
        _attn_head_kernel,
        out_shape=jax.ShapeDtypeStruct((B, N, C), jnp.float32),
        grid_spec=pltpu.PrefetchScalarGridSpec(
            num_scalar_prefetch=0,
            grid=(B, num_heads),
            in_specs=[
                pl.BlockSpec((1, N, C), lambda b, h: (b, 0, 0)),   # x  (per batch)
                pl.BlockSpec((1, C, W), lambda b, h: (h, 0, 0)),   # w_main (per head)
                pl.BlockSpec((1, C, W), lambda b, h: (h, 0, 0)),   # w_rot  (per head)
                pl.BlockSpec((N, W), lambda b, h: (0, 0)),         # cos slab
                pl.BlockSpec((N, W), lambda b, h: (0, 0)),         # sin slab
                pl.BlockSpec((1, C), lambda b, h: (0, 0)),         # proj bias
            ],
            out_specs=pl.BlockSpec((1, N, C), lambda b, h: (b, 0, 0)),
            scratch_shapes=[pltpu.VMEM((N, C), jnp.float32)],
        ),
        compiler_params=pltpu.CompilerParams(
            dimension_semantics=("parallel", "arbitrary")),
    )(x, params["w_main"], params["w_rot"], params["cos"], params["sin"],
      params["b_proj"])


# ------------------------- parameter / rope helpers -------------------------

def build_rope_tables(head_dim, pt_seq_len=16, theta=10000.0):
    """VisionRotaryEmbeddingFast(dim=head_dim//2, pt_seq_len) cos/sin tables."""
    half = head_dim // 2
    inv_freq = 1.0 / (theta ** (np.arange(0, half, 2, dtype=np.float32) / half))
    t = np.arange(pt_seq_len, dtype=np.float32) / pt_seq_len * pt_seq_len
    f = np.einsum("i,j->ij", t, inv_freq)                # (S, half//2)
    f = np.repeat(f, 2, axis=-1)                         # (S, half) interleaved
    fy = np.broadcast_to(f[:, None, :], (pt_seq_len, pt_seq_len, half))
    fx = np.broadcast_to(f[None, :, :], (pt_seq_len, pt_seq_len, half))
    freqs = np.concatenate([fy, fx], axis=-1)            # (S, S, head_dim)
    cos = np.cos(freqs).reshape(-1, head_dim).astype(np.float32)   # (S*S, head_dim)
    sin = np.sin(freqs).reshape(-1, head_dim).astype(np.float32)
    return cos, sin


def build_rotate_half_matrix(width):
    """rotate_half(t) == t @ R : out[2i] = -t[2i+1], out[2i+1] = t[2i]."""
    R = np.zeros((width, width), dtype=np.float32)
    for i in range(width // 2):
        R[2 * i + 1, 2 * i] = -1.0
        R[2 * i, 2 * i + 1] = 1.0
    return R


def prepare_params(w_qkv, w_proj, b_proj, num_heads, head_dim, pt_seq_len=16):
    """One-time host prep: transpose weights, fold rotate_half + scale into the q/k
    weights, fold the OUTPUT PROJECTION into the per-head value weights, build
    lane-dense padded cos/sin slabs, and cast matmul weights to bf16."""
    H, D = num_heads, head_dim
    C = H * D
    N = pt_seq_len * pt_seq_len
    scale = D ** (-0.5)
    R = build_rotate_half_matrix(D)

    w_qkv = np.asarray(w_qkv, np.float32)                 # torch layout (3C, C) = (out, in)
    wq = w_qkv[:C].T                                      # (C_in, C)
    wk = w_qkv[C:2 * C].T
    wv = w_qkv[2 * C:].T
    wp = np.asarray(w_proj, np.float32).T                 # (C_in, C_out)

    Wcols = 2 * D + C
    w_main = np.zeros((H, C, Wcols), np.float32)
    w_rot = np.zeros((H, C, Wcols), np.float32)
    for h in range(H):
        lo, hi = h * D, (h + 1) * D
        w_main[h, :, :D] = wq[:, lo:hi] * scale
        w_main[h, :, D:2 * D] = wk[:, lo:hi]
        w_main[h, :, 2 * D:] = wv[:, lo:hi] @ wp[lo:hi, :]         # proj folded into v
        w_rot[h, :, :D] = (wq[:, lo:hi] @ R) * scale
        w_rot[h, :, D:2 * D] = wk[:, lo:hi] @ R
        # value-proj columns of w_rot stay zero (RoPE does not touch v)

    cos, sin = build_rope_tables(D, pt_seq_len)                    # (N, D)
    cosT = np.concatenate([cos, cos, np.ones((N, C), np.float32)], axis=1)   # (N, W)
    sinT = np.concatenate([sin, sin, np.zeros((N, C), np.float32)], axis=1)  # (N, W)

    return dict(
        w_main=jnp.asarray(w_main, jnp.bfloat16),
        w_rot=jnp.asarray(w_rot, jnp.bfloat16),
        cos=jnp.asarray(cosT, jnp.float32),    # f32 kept for v5e safety / precision
        sin=jnp.asarray(sinT, jnp.float32),
        b_proj=jnp.asarray(np.asarray(b_proj, np.float32).reshape(1, C)),
    )


# --------------------------- pure-JAX reference ------------------------------

def attention_reference(x, w_qkv, w_proj, b_proj, mask, cos, sin, num_heads):
    """Mirrors the PyTorch module (training path) with unfused f32 math."""
    B, N, C = x.shape
    H = num_heads
    D = C // H
    scale = D ** (-0.5)
    qkv = x @ w_qkv.T
    qkv = qkv.reshape(B, N, 3, H, D).transpose(2, 0, 3, 1, 4)
    q, k, v = qkv[0], qkv[1], qkv[2]

    def rotate_half(t):
        t2 = t.reshape(*t.shape[:-1], D // 2, 2)
        return jnp.stack([-t2[..., 1], t2[..., 0]], axis=-1).reshape(t.shape)

    q = q * cos + rotate_half(q) * sin
    k = k * cos + rotate_half(k) * sin
    s = jnp.einsum("bhnd,bhmd->bhnm", q, k) * scale + mask
    attn = jax.nn.softmax(s, axis=-1)
    o = jnp.einsum("bhnm,bhmd->bhnd", attn, v)
    o = o.transpose(0, 2, 1, 3).reshape(B, N, C)
    return o @ w_proj.T + b_proj


# ----------------------------------- main ------------------------------------

if __name__ == "__main__":
    # dim=32, num_heads=4 -> head_dim=8; rope over a 16x16 grid -> N=256.
    B, C, H = 2, 32, 4
    D = C // H
    PT = 16
    N = PT * PT

    key = jax.random.PRNGKey(0)
    k1, k2, k3, k4 = jax.random.split(key, 4)
    w_qkv = 0.2 * jax.random.normal(k1, (3 * C, C), jnp.float32)   # torch (out, in)
    w_proj = 0.2 * jax.random.normal(k2, (C, C), jnp.float32)      # torch (out, in)
    b_proj = 0.2 * jax.random.normal(k3, (C,), jnp.float32)
    x = jax.random.normal(k4, (B, N, C), jnp.float32)

    params = prepare_params(np.asarray(w_qkv), np.asarray(w_proj),
                            np.asarray(b_proj), num_heads=H, head_dim=D,
                            pt_seq_len=PT)

    out = jax.block_until_ready(attention_forward(x, params, num_heads=H))

    # reference (explicit causal mask, unfused rope / weights, f32 math)
    cos_np, sin_np = build_rope_tables(D, pt_seq_len=PT)
    ii = np.arange(N)[:, None]
    jj = np.arange(N)[None, :]
    mask = jnp.asarray(np.where(jj <= ii, 0.0, -1e30).astype(np.float32))
    ref = jax.block_until_ready(
        attention_reference(x, w_qkv, w_proj, b_proj, mask,
                            jnp.asarray(cos_np), jnp.asarray(sin_np), H))

    assert out.shape == (B, N, C), out.shape
    err = float(np.max(np.abs(np.asarray(out) - np.asarray(ref))))
    assert np.allclose(np.asarray(out), np.asarray(ref), rtol=5e-2, atol=5e-2), err
    print("KERNEL_OK")
</pallas_src>

<mosaic_0001>
module attributes {stable_mosaic.version = 11 : i64} {
  func.func @_attn_head_kernel(%arg0: i32, %arg1: i32, %arg2: memref<1x256x32xf32, #tpu.memory_space<vmem>>, %arg3: memref<1x32x48xbf16, #tpu.memory_space<vmem>>, %arg4: memref<1x32x48xbf16, #tpu.memory_space<vmem>>, %arg5: memref<256x48xf32, #tpu.memory_space<vmem>>, %arg6: memref<256x48xf32, #tpu.memory_space<vmem>>, %arg7: memref<1x32xf32, #tpu.memory_space<vmem>>, %arg8: memref<1x256x32xf32, #tpu.memory_space<vmem>>, %arg9: memref<256x32xf32, #tpu.memory_space<vmem>>) attributes {dimension_semantics = [#tpu.dimension_semantics<parallel>, #tpu.dimension_semantics<arbitrary>], iteration_bounds = array<i64: 2, 4>, scalar_prefetch = 0 : i64, scratch_operands = 1 : i64, tpu.core_type = #tpu.core_type<tc>, window_params = [{transform_indices = @transform_0, window_bounds = array<i64: 1, 256, 32>}, {transform_indices = @transform_1, window_bounds = array<i64: 1, 32, 48>}, {transform_indices = @transform_2, window_bounds = array<i64: 1, 32, 48>}, {pipeline_mode = #tpu.pipeline_mode<synchronous>, transform_indices = @transform_3, window_bounds = array<i64: 256, 48>}, {pipeline_mode = #tpu.pipeline_mode<synchronous>, transform_indices = @transform_4, window_bounds = array<i64: 256, 48>}, {pipeline_mode = #tpu.pipeline_mode<synchronous>, transform_indices = @transform_5, window_bounds = array<i64: 1, 32>}, {transform_indices = @transform_6, window_bounds = array<i64: 1, 256, 32>}]} {
    %c0_i32 = arith.constant 0 : i32
    %0 = arith.cmpi eq, %arg1, %c0_i32 : i32
    %1 = arith.extui %0 : i1 to i32
    %c0_i32_0 = arith.constant 0 : i32
    %2 = arith.cmpi ne, %1, %c0_i32_0 : i32
    scf.if %2 {
      %cst_24 = arith.constant 0.000000e+00 : f32
      %47 = vector.broadcast %cst_24 : f32 to vector<256x32xf32>
      %c0_25 = arith.constant 0 : index
      %c0_26 = arith.constant 0 : index
      %48 = vector.load %arg9[%c0_25, %c0_26] : memref<256x32xf32, #tpu.memory_space<vmem>>, vector<256x32xf32>
      tpu.vector_store %arg9[%c0_25, %c0_26], %47 {strides = array<i32>} : memref<256x32xf32, #tpu.memory_space<vmem>>, vector<256x32xf32>,
    } else {
    }
    %c0 = arith.constant 0 : index
    %c0_1 = arith.constant 0 : index
    %c0_2 = arith.constant 0 : index
    %3 = vector.load %arg2[%c0, %c0_1, %c0_2] : memref<1x256x32xf32, #tpu.memory_space<vmem>>, vector<1x256x32xf32>
    %4 = vector.shape_cast %3 : vector<1x256x32xf32> to vector<256x32xf32>
    %5 = arith.truncf %4 : vector<256x32xf32> to vector<256x32xbf16>
    %c0_3 = arith.constant 0 : index
    %c0_4 = arith.constant 0 : index
    %c0_5 = arith.constant 0 : index
    %6 = vector.load %arg3[%c0_3, %c0_4, %c0_5] : memref<1x32x48xbf16, #tpu.memory_space<vmem>>, vector<1x32x48xbf16>
    %7 = vector.shape_cast %6 : vector<1x32x48xbf16> to vector<32x48xbf16>
    %cst = arith.constant dense<0.000000e+00> : vector<256x48xf32>
    %8 = tpu.matmul %5, %7, %cst {dimension_numbers = #tpu.dot_dimension_numbers<[1], [0], [0], [1], [0, 0, 1, 1], [], []>} : vector<256x32xbf16>, vector<32x48xbf16>, vector<256x48xf32> -> vector<256x48xf32>
    %c0_6 = arith.constant 0 : index
    %c0_7 = arith.constant 0 : index
    %c0_8 = arith.constant 0 : index
    %9 = vector.load %arg4[%c0_6, %c0_7, %c0_8] : memref<1x32x48xbf16, #tpu.memory_space<vmem>>, vector<1x32x48xbf16>
    %10 = vector.shape_cast %9 : vector<1x32x48xbf16> to vector<32x48xbf16>
    %cst_9 = arith.constant dense<0.000000e+00> : vector<256x48xf32>
    %11 = tpu.matmul %5, %10, %cst_9 {dimension_numbers = #tpu.dot_dimension_numbers<[1], [0], [0], [1], [0, 0, 1, 1], [], []>} : vector<256x32xbf16>, vector<32x48xbf16>, vector<256x48xf32> -> vector<256x48xf32>
    %c0_10 = arith.constant 0 : index
    %c0_11 = arith.constant 0 : index
    %12 = vector.load %arg5[%c0_10, %c0_11] : memref<256x48xf32, #tpu.memory_space<vmem>>, vector<256x48xf32>
    %13 = arith.mulf %8, %12 : vector<256x48xf32>
    %c0_12 = arith.constant 0 : index
    %c0_13 = arith.constant 0 : index
    %14 = vector.load %arg6[%c0_12, %c0_13] : memref<256x48xf32, #tpu.memory_space<vmem>>, vector<256x48xf32>
    %15 = arith.mulf %11, %14 : vector<256x48xf32>
    %16 = arith.addf %13, %15 : vector<256x48xf32>
    %17 = vector.extract_strided_slice %16 {offsets = [0, 0], sizes = [256, 8], strides = [1, 1]} : vector<256x48xf32> to vector<256x8xf32>
    %18 = arith.truncf %17 : vector<256x8xf32> to vector<256x8xbf16>
    %19 = vector.extract_strided_slice %16 {offsets = [0, 8], sizes = [256, 8], strides = [1, 1]} : vector<256x48xf32> to vector<256x8xf32>
    %20 = arith.truncf %19 : vector<256x8xf32> to vector<256x8xbf16>
    %21 = vector.extract_strided_slice %16 {offsets = [0, 16], sizes = [256, 32], strides = [1, 1]} : vector<256x48xf32> to vector<256x32xf32>
    %22 = arith.truncf %21 : vector<256x32xf32> to vector<256x32xbf16>
    %cst_14 = arith.constant dense<0.000000e+00> : vector<256x256xf32>
    %23 = tpu.matmul %18, %20, %cst_14 {dimension_numbers = #tpu.dot_dimension_numbers<[1], [1], [0], [0], [0, 0, 1, 0], [], []>} : vector<256x8xbf16>, vector<256x8xbf16>, vector<256x256xf32> -> vector<256x256xf32>
    %24 = tpu.iota {dimensions = array<i32: 0>} : vector<256x256xi32>
    %25 = tpu.iota {dimensions = array<i32: 1>} : vector<256x256xi32>
    %26 = arith.cmpi sle, %25, %24 : vector<256x256xi32>
    %cst_15 = arith.constant -1.000000e+30 : f32
    %27 = vector.broadcast %cst_15 : f32 to vector<256x256xf32>
    %28 = arith.select %26, %23, %27 : vector<256x256xi1>, vector<256x256xf32>
    %cst_16 = arith.constant dense<0xFF800000> : vector<256xf32>
    %29 = vector.multi_reduction <maximumf>, %28, %cst_16 [1] : vector<256x256xf32> to vector<256xf32>
    %30 = vector.shape_cast %29 : vector<256xf32> to vector<256x1xf32>
    %31 = vector.broadcast %30 : vector<256x1xf32> to vector<256x256xf32>
    %32 = arith.subf %28, %31 : vector<256x256xf32>
    %33 = math.exp %32 : vector<256x256xf32>
    %cst_17 = arith.constant dense<0.000000e+00> : vector<256xf32>
    %34 = vector.multi_reduction <add>, %33, %cst_17 [1] : vector<256x256xf32> to vector<256xf32>
    %35 = vector.shape_cast %34 : vector<256xf32> to vector<256x1xf32>
    %36 = arith.truncf %33 : vector<256x256xf32> to vector<256x256xbf16>
    %cst_18 = arith.constant dense<0.000000e+00> : vector<256x32xf32>
    %37 = tpu.matmul %36, %22, %cst_18 {dimension_numbers = #tpu.dot_dimension_numbers<[1], [0], [0], [1], [0, 0, 1, 1], [], []>} : vector<256x256xbf16>, vector<256x32xbf16>, vector<256x32xf32> -> vector<256x32xf32>
    %c0_19 = arith.constant 0 : index
    %c0_20 = arith.constant 0 : index
    %38 = vector.load %arg9[%c0_19, %c0_20] : memref<256x32xf32, #tpu.memory_space<vmem>>, vector<256x32xf32>
    %39 = tpu.reciprocal %35 {approx = true} : vector<256x1xf32> -> vector<256x1xf32>
    %40 = vector.broadcast %39 : vector<256x1xf32> to vector<256x32xf32>
    %41 = arith.mulf %37, %40 : vector<256x32xf32>
    %42 = arith.addf %38, %41 : vector<256x32xf32>
    %c0_21 = arith.constant 0 : index
    %c0_22 = arith.constant 0 : index
    %43 = vector.load %arg9[%c0_21, %c0_22] : memref<256x32xf32, #tpu.memory_space<vmem>>, vector<256x32xf32>
    tpu.vector_store %arg9[%c0_21, %c0_22], %42 {strides = array<i32>} : memref<256x32xf32, #tpu.memory_space<vmem>>, vector<256x32xf32>,
    %c3_i32 = arith.constant 3 : i32
    %44 = arith.cmpi eq, %arg1, %c3_i32 : i32
    %45 = arith.extui %44 : i1 to i32
    %c0_i32_23 = arith.constant 0 : i32
    %46 = arith.cmpi ne, %45, %c0_i32_23 : i32
    scf.if %46 {
      %c0_24 = arith.constant 0 : index
      %c0_25 = arith.constant 0 : index
      %47 = vector.load %arg9[%c0_24, %c0_25] : memref<256x32xf32, #tpu.memory_space<vmem>>, vector<256x32xf32>
      %c0_26 = arith.constant 0 : index
      %c0_27 = arith.constant 0 : index
      %48 = vector.load %arg7[%c0_26, %c0_27] : memref<1x32xf32, #tpu.memory_space<vmem>>, vector<1x32xf32>
      %49 = vector.broadcast %48 : vector<1x32xf32> to vector<256x32xf32>
      %50 = arith.addf %47, %49 : vector<256x32xf32>
      %c0_28 = arith.constant 0 : index
      %c0_29 = arith.constant 0 : index
      %c0_30 = arith.constant 0 : index
      %51 = vector.load %arg8[%c0_28, %c0_29, %c0_30] : memref<1x256x32xf32, #tpu.memory_space<vmem>>, vector<1x256x32xf32>
      %52 = vector.shape_cast %51 : vector<1x256x32xf32> to vector<256x32xf32>
      %53 = vector.shape_cast %50 : vector<256x32xf32> to vector<1x256x32xf32>
      tpu.vector_store %arg8[%c0_28, %c0_29, %c0_30], %53 {strides = array<i32>} : memref<1x256x32xf32, #tpu.memory_space<vmem>>, vector<1x256x32xf32>,
    } else {
    }
    return
  }
  func.func @transform_0(%arg0: i32, %arg1: i32) -> (i32, i32, i32) {
    %c0_i32 = arith.constant 0 : i32
    %c0_i32_0 = arith.constant 0 : i32
    %c0_i32_1 = arith.constant 0 : i32
    return %arg0, %c0_i32, %c0_i32_0 : i32, i32, i32
  }
  func.func @transform_1(%arg0: i32, %arg1: i32) -> (i32, i32, i32) {
    %c0_i32 = arith.constant 0 : i32
    %c0_i32_0 = arith.constant 0 : i32
    %c0_i32_1 = arith.constant 0 : i32
    return %arg1, %c0_i32, %c0_i32_0 : i32, i32, i32
  }
  func.func @transform_2(%arg0: i32, %arg1: i32) -> (i32, i32, i32) {
    %c0_i32 = arith.constant 0 : i32
    %c0_i32_0 = arith.constant 0 : i32
    %c0_i32_1 = arith.constant 0 : i32
    return %arg1, %c0_i32, %c0_i32_0 : i32, i32, i32
  }
  func.func @transform_3(%arg0: i32, %arg1: i32) -> (i32, i32) {
    %c0_i32 = arith.constant 0 : i32
    %c0_i32_0 = arith.constant 0 : i32
    %c0_i32_1 = arith.constant 0 : i32
    return %c0_i32, %c0_i32_0 : i32, i32
  }
  func.func @transform_4(%arg0: i32, %arg1: i32) -> (i32, i32) {
    %c0_i32 = arith.constant 0 : i32
    %c0_i32_0 = arith.constant 0 : i32
    %c0_i32_1 = arith.constant 0 : i32
    return %c0_i32, %c0_i32_0 : i32, i32
  }
  func.func @transform_5(%arg0: i32, %arg1: i32) -> (i32, i32) {
    %c0_i32 = arith.constant 0 : i32
    %c0_i32_0 = arith.constant 0 : i32
    %c0_i32_1 = arith.constant 0 : i32
    return %c0_i32, %c0_i32_0 : i32, i32
  }
  func.func @transform_6(%arg0: i32, %arg1: i32) -> (i32, i32, i32) {
    %c0_i32 = arith.constant 0 : i32
    %c0_i32_0 = arith.constant 0 : i32
    %c0_i32_1 = arith.constant 0 : i32
    return %arg0, %c0_i32, %c0_i32_0 : i32, i32, i32
  }
}

</mosaic_0001>

<llo_original>
// kernel: tpu_custom_call.1
$region0: #{tpu_custom_call.1}
  #allocation0 [shape = 'u32[]', space=smem, size = 0x4, offset = 0x4, fixed_abs, tag = 'smem constant byte address 0x4 - core index']
  #allocation1 [shape = 'u32[144,128]{1,0:T(1,128)}', space=vmem, size = 0x12000, scoped, tag = 'internal scratch']
  #allocation2 [shape = 'f32[256,32]{1,0:T(8,128)}', space=vmem, size = 0x20000, scoped, tag = 'scratch operand']
  %s0 = inlined_call_operand.vmem [shape: f32[2,256,32], index: 0, kind: input, shape index: {}]
  %s1 = inlined_call_operand.vmem [shape: bf16[4,32,48], index: 1, kind: input, shape index: {}]
  %s2 = inlined_call_operand.vmem [shape: bf16[4,32,48], index: 2, kind: input, shape index: {}]
  %s3 = inlined_call_operand.vmem [shape: f32[256,48], index: 3, kind: input, shape index: {}]
  %s4 = inlined_call_operand.vmem [shape: f32[256,48], index: 4, kind: input, shape index: {}]
  %s5 = inlined_call_operand.vmem [shape: f32[1,32], index: 5, kind: input, shape index: {}]
  %s6 = inlined_call_operand.vmem [shape: f32[2,256,32], index: 6, kind: output, shape index: {}]
  %s7 = sld [smem:[#allocation0]]
  $region65: #{tpu_custom_call.1} parent=0
    _
  %s9 = ssub.s32 1, %s7
  %s10 = scalar_select 0, %s9, %s7
  loop: start=0, step=1, limit=10
  $region2: #{tpu_custom_call.1} parent=0 // loop_pre_header
    _
  $region3: #{tpu_custom_call.1} parent=0 // loop_header
    %s12 = sphi 0, %s16
    %p13 = scmp.ge.s32.totalorder %s12, 10
    %s19 = sphi 0, %s31
    %s20 = sphi 0, %s27
    %s21 = sphi 0, %s19
    %s22 = sphi 0, %s20
    %s23 = sphi 0, %s21
    %s24 = sphi 0, %s22
    %s34 = sphi 0, %s36
    %s37 = sphi 0, %s34
    %s38 = sphi 0, %s37
    %s54 = sphi 0, %s38
    %s60 = sphi 0, %s62
    %s63 = sphi 0, %s60
    %s64 = sphi 0, %s63
    %s80 = sphi 0, %s64
    %s86 = sphi 0, %s88
    %s89 = sphi 0, %s86
    %s90 = sphi 0, %s89
    %s106 = sphi 0, %s90
    %s110 = sphi 0, %s110
    %s112 = sphi 0, %s110
    %s113 = sphi 0, %s112
    %s127 = sphi 0, %s113
    %s131 = sphi 0, %s131
    %s133 = sphi 0, %s131
    %s134 = sphi 0, %s133
    %s148 = sphi 0, %s134
    %s152 = sphi 0, %s152
    %s154 = sphi 0, %s152
    %s155 = sphi 0, %s154
    %s169 = sphi 0, %s155
    %s175 = sphi 0, %s177
    %s178 = sphi 0, %s175
    %s179 = sphi 0, %s178
    %s195 = sphi 0, %s179
  $region4: #{tpu_custom_call.1} parent=0 // loop_header_branch
    %15 = sbr.rel (%p13) target = $region8
  $region5: #{tpu_custom_call.1} parent=0 // loop_body
    %s17 = ssub.s32 %s12, 1
    %s18 = ssub.s32 %s12, 2
    %s25 = sadd.s32 1, %s20
    %p26 = scmp.ge.s32.totalorder %s25, 4
    %s27 = scalar_select %p26, 0, %s25
    %s28 = sadd.s32 1, %s19
    %s29 = scalar_select %p26, %s28, %s19
    %p30 = scmp.ge.s32.totalorder %s29, 2
    %s31 = scalar_select %p30, 0, %s29
    %s32 = ssub.s32 %s19, %s31
    %p33 = scmp.eq.s32.totalorder %s32, 0
    %s35 = sadd.s32 %s34, 1
    %s36 = scalar_select %p33, %s34, %s35
    %p39 = pneg %p33
    %p40 = scmp.eq.s32.totalorder %s12, 7
    %p41 = por %p39, %p40
    %p42 = scmp.ne.s32.totalorder %s34, %s37
    %p43 = scmp.eq.s32.totalorder %s12, 0
    %p44 = por %p42, %p43
    %p45 = scmp.ne.s32.totalorder %s34, %s37
    %p46 = scmp.eq.s32.totalorder %s17, 7
    %p47 = por %p45, %p46
    %p48 = scmp.ne.s32.totalorder %s37, %s38
    %p49 = scmp.eq.s32.totalorder %s17, 0
    %p50 = por %p48, %p49
    %p51 = scmp.ne.s32.totalorder %s37, %s38
    %p52 = scmp.eq.s32.totalorder %s18, 7
    %p53 = por %p51, %p52
    %p55 = scmp.ne.s32.totalorder %s38, %s54
    %p56 = scmp.eq.s32.totalorder %s18, 0
    %p57 = por %p55, %p56
    %s58 = ssub.s32 %s20, %s27
    %p59 = scmp.eq.s32.totalorder %s58, 0
    %s61 = sadd.s32 %s60, 1
    %s62 = scalar_select %p59, %s60, %s61
    %p65 = pneg %p59
    %p66 = scmp.eq.s32.totalorder %s12, 7
    %p67 = por %p65, %p66
    %p68 = scmp.ne.s32.totalorder %s60, %s63
    %p69 = scmp.eq.s32.totalorder %s12, 0
    %p70 = por %p68, %p69
    %p71 = scmp.ne.s32.totalorder %s60, %s63
    %p72 = scmp.eq.s32.totalorder %s17, 7
    %p73 = por %p71, %p72
    %p74 = scmp.ne.s32.totalorder %s63, %s64
    %p75 = scmp.eq.s32.totalorder %s17, 0
    %p76 = por %p74, %p75
    %p77 = scmp.ne.s32.totalorder %s63, %s64
    %p78 = scmp.eq.s32.totalorder %s18, 7
    %p79 = por %p77, %p78
    %p81 = scmp.ne.s32.totalorder %s64, %s80
    %p82 = scmp.eq.s32.totalorder %s18, 0
    %p83 = por %p81, %p82
    %s84 = ssub.s32 %s20, %s27
    %p85 = scmp.eq.s32.totalorder %s84, 0
    %s87 = sadd.s32 %s86, 1
    %s88 = scalar_select %p85, %s86, %s87
    %p91 = pneg %p85
    %p92 = scmp.eq.s32.totalorder %s12, 7
    %p93 = por %p91, %p92
    %p94 = scmp.ne.s32.totalorder %s86, %s89
    %p95 = scmp.eq.s32.totalorder %s12, 0
    %p96 = por %p94, %p95
    %p97 = scmp.ne.s32.totalorder %s86, %s89
    %p98 = scmp.eq.s32.totalorder %s17, 7
    %p99 = por %p97, %p98
    %p100 = scmp.ne.s32.totalorder %s89, %s90
    %p101 = scmp.eq.s32.totalorder %s17, 0
    %p102 = por %p100, %p101
    %p103 = scmp.ne.s32.totalorder %s89, %s90
    %p104 = scmp.eq.s32.totalorder %s18, 7
    %p105 = por %p103, %p104
    %p107 = scmp.ne.s32.totalorder %s90, %s106
    %p108 = scmp.eq.s32.totalorder %s18, 0
    %p109 = por %p107, %p108
    %s111 = sadd.s32 %s110, 1
    %p114 = scmp.eq.s32.totalorder %s12, 7
    %p115 = scmp.ne.s32.totalorder %s110, %s112
    %p116 = scmp.eq.s32.totalorder %s12, 0
    %p117 = por %p115, %p116
    %p118 = scmp.ne.s32.totalorder %s110, %s112
    %p119 = scmp.eq.s32.totalorder %s17, 7
    %p120 = por %p118, %p119
    %p121 = scmp.ne.s32.totalorder %s112, %s113
    %p122 = scmp.eq.s32.totalorder %s17, 0
    %p123 = por %p121, %p122
    %p124 = scmp.ne.s32.totalorder %s112, %s113
    %p125 = scmp.eq.s32.totalorder %s18, 7
    %p126 = por %p124, %p125
    %p128 = scmp.ne.s32.totalorder %s113, %s127
    %p129 = scmp.eq.s32.totalorder %s18, 0
    %p130 = por %p128, %p129
    %s132 = sadd.s32 %s131, 1
    %p135 = scmp.eq.s32.totalorder %s12, 7
    %p136 = scmp.ne.s32.totalorder %s131, %s133
    %p137 = scmp.eq.s32.totalorder %s12, 0
    %p138 = por %p136, %p137
    %p139 = scmp.ne.s32.totalorder %s131, %s133
    %p140 = scmp.eq.s32.totalorder %s17, 7
    %p141 = por %p139, %p140
    %p142 = scmp.ne.s32.totalorder %s133, %s134
    %p143 = scmp.eq.s32.totalorder %s17, 0
    %p144 = por %p142, %p143
    %p145 = scmp.ne.s32.totalorder %s133, %s134
    %p146 = scmp.eq.s32.totalorder %s18, 7
    %p147 = por %p145, %p146
    %p149 = scmp.ne.s32.totalorder %s134, %s148
    %p150 = scmp.eq.s32.totalorder %s18, 0
    %p151 = por %p149, %p150
    %s153 = sadd.s32 %s152, 1
    %p156 = scmp.eq.s32.totalorder %s12, 7
    %p157 = scmp.ne.s32.totalorder %s152, %s154
    %p158 = scmp.eq.s32.totalorder %s12, 0
    %p159 = por %p157, %p158
    %p160 = scmp.ne.s32.totalorder %s152, %s154
    %p161 = scmp.eq.s32.totalorder %s17, 7
    %p162 = por %p160, %p161
    %p163 = scmp.ne.s32.totalorder %s154, %s155
    %p164 = scmp.eq.s32.totalorder %s17, 0
    %p165 = por %p163, %p164
    %p166 = scmp.ne.s32.totalorder %s154, %s155
    %p167 = scmp.eq.s32.totalorder %s18, 7
    %p168 = por %p166, %p167
    %p170 = scmp.ne.s32.totalorder %s155, %s169
    %p171 = scmp.eq.s32.totalorder %s18, 0
    %p172 = por %p170, %p171
    %s173 = ssub.s32 %s19, %s31
    %p174 = scmp.eq.s32.totalorder %s173, 0
    %s176 = sadd.s32 %s175, 1
    %s177 = scalar_select %p174, %s175, %s176
    %p180 = pneg %p174
    %p181 = scmp.eq.s32.totalorder %s12, 7
    %p182 = por %p180, %p181
    %p183 = scmp.ne.s32.totalorder %s175, %s178
    %p184 = scmp.eq.s32.totalorder %s12, 0
    %p185 = por %p183, %p184
    %p186 = scmp.ne.s32.totalorder %s175, %s178
    %p187 = scmp.eq.s32.totalorder %s17, 7
    %p188 = por %p186, %p187
    %p189 = scmp.ne.s32.totalorder %s178, %s179
    %p190 = scmp.eq.s32.totalorder %s17, 0
    %p191 = por %p189, %p190
    %p192 = scmp.ne.s32.totalorder %s178, %s179
    %p193 = scmp.eq.s32.totalorder %s18, 7
    %p194 = por %p192, %p193
    %p196 = scmp.ne.s32.totalorder %s179, %s195
    %p197 = scmp.eq.s32.totalorder %s18, 0
    %p198 = por %p196, %p197
    %p199 = scmp.le.s32.totalorder 1, %s12
    %p200 = scmp.lt.s32.totalorder %s12, 9
    %p201 = pnand %p199, %p200
    %p202 = pneg %p201
    // Predicated region
    $region9: #{tpu_custom_call.1} parent=5 // pred_check
      _
    $region10: #{tpu_custom_call.1} parent=5 // pred_check_branch
      %204 = sbr.rel (%p201) target = $region12
    $region11: #{tpu_custom_call.1} parent=5 // pred_region
      %s205 = ssub.s32 %s12, 1
      // Predicated region
      $region13: #{tpu_custom_call.1} parent=11 // pred_check
        %p206 = pneg %p123
      $region14: #{tpu_custom_call.1} parent=11 // pred_check_branch
        %208 = sbr.rel (%p206) target = $region16
      $region15: #{tpu_custom_call.1} parent=11 // pred_region
        _
      $region16: #{tpu_custom_call.1} parent=11 // pred_fallthru
        _
      // Predicated region
      $region17: #{tpu_custom_call.1} parent=11 // pred_check
        %p209 = pneg %p144
      $region18: #{tpu_custom_call.1} parent=11 // pred_check_branch
        %211 = sbr.rel (%p209) target = $region20
      $region19: #{tpu_custom_call.1} parent=11 // pred_region
        _
      $region20: #{tpu_custom_call.1} parent=11 // pred_fallthru
        _
      // Predicated region
      $region21: #{tpu_custom_call.1} parent=11 // pred_check
        %p212 = pneg %p165
      $region22: #{tpu_custom_call.1} parent=11 // pred_check_branch
        %214 = sbr.rel (%p212) target = $region24
      $region23: #{tpu_custom_call.1} parent=11 // pred_region
        _
      $region24: #{tpu_custom_call.1} parent=11 // pred_fallthru
        _
    $region12: #{tpu_custom_call.1} parent=5 // pred_fallthru
      _
    %p215 = scmp.lt.s32.totalorder %s12, 8
    // Predicated region
    $region25: #{tpu_custom_call.1} parent=5 // pred_check
      %p216 = pneg %p215
    $region26: #{tpu_custom_call.1} parent=5 // pred_check_branch
      %218 = sbr.rel (%p216) target = $region28
    $region27: #{tpu_custom_call.1} parent=5 // pred_region
      // Predicated region
      $region29: #{tpu_custom_call.1} parent=27 // pred_check
        %p219 = pneg %p44
      $region30: #{tpu_custom_call.1} parent=27 // pred_check_branch
        %221 = sbr.rel (%p219) target = $region32
      $region31: #{tpu_custom_call.1} parent=27 // pred_region
        %p222 = scmp.lt.s32.totalorder %s19, 1
        %s223 = scalar_select %p222, %s19, 1
        %s224 = smul.addr %s223, 32
        %s225 = smul.addr %s224, 8
        %s226 = scalar_lea.vmem %s0, %s225
      $region32: #{tpu_custom_call.1} parent=27 // pred_fallthru
        _
      // Predicated region
      $region33: #{tpu_custom_call.1} parent=27 // pred_check
        %p227 = pneg %p70
      $region34: #{tpu_custom_call.1} parent=27 // pred_check_branch
        %229 = sbr.rel (%p227) target = $region36
      $region35: #{tpu_custom_call.1} parent=27 // pred_region
        %p230 = scmp.lt.s32.totalorder %s20, 3
        %s231 = scalar_select %p230, %s20, 3
        %s232 = smul.addr %s231, 4
        %s233 = smul.addr %s232, 4
        %s234 = scalar_lea.vmem %s1, %s233
      $region36: #{tpu_custom_call.1} parent=27 // pred_fallthru
        _
      // Predicated region
      $region37: #{tpu_custom_call.1} parent=27 // pred_check
        %p235 = pneg %p96
      $region38: #{tpu_custom_call.1} parent=27 // pred_check_branch
        %237 = sbr.rel (%p235) target = $region40
      $region39: #{tpu_custom_call.1} parent=27 // pred_region
        %p238 = scmp.lt.s32.totalorder %s20, 3
        %s239 = scalar_select %p238, %s20, 3
        %s240 = smul.addr %s239, 4
        %s241 = smul.addr %s240, 4
        %s242 = scalar_lea.vmem %s2, %s241
      $region40: #{tpu_custom_call.1} parent=27 // pred_fallthru
        _
    $region28: #{tpu_custom_call.1} parent=5 // pred_fallthru
      _
    %p243 = scmp.le.s32.totalorder 1, %s12
    %p244 = scmp.lt.s32.totalorder %s12, 9
    %p245 = pnand %p243, %p244
    %p246 = pneg %p245
    // Predicated region
    $region41: #{tpu_custom_call.1} parent=5 // pred_check
      _
    $region42: #{tpu_custom_call.1} parent=5 // pred_check_branch
      %248 = sbr.rel (%p245) target = $region44
    $region43: #{tpu_custom_call.1} parent=5 // pred_region
      %s249 = ssub.s32 %s12, 1
      %p250 = scmp.lt.s32.totalorder %s21, 1
      %s251 = scalar_select %p250, %s21, 1
      %s252 = smul.addr %s251, 32
      %s253 = smul.addr %s252, 8
      %s254 = scalar_lea.vmem %s0, %s253
      %p255 = pneg %p50
      %p256 = pneg %p47
      %p257 = scmp.lt.s32.totalorder %s22, 3
      %s258 = scalar_select %p257, %s22, 3
      %s259 = smul.addr %s258, 4
      %s260 = smul.addr %s259, 4
      %s261 = scalar_lea.vmem %s1, %s260
      %p262 = pneg %p76
      %p263 = pneg %p73
      %p264 = scmp.lt.s32.totalorder %s22, 3
      %s265 = scalar_select %p264, %s22, 3
      %s266 = smul.addr %s265, 4
      %s267 = smul.addr %s266, 4
      %s268 = scalar_lea.vmem %s2, %s267
      %p269 = pneg %p102
      %p270 = pneg %p99
      %p271 = pneg %p123
      %p272 = pneg %p120
      %p273 = pneg %p144
      %p274 = pneg %p141
      %p275 = pneg %p165
      %p276 = pneg %p162
      %p277 = pneg %p191
      %p278 = pneg %p188
      %p279 = scmp.lt.s32.totalorder %s21, 1
      %s280 = scalar_select %p279, %s21, 1
      %s281 = smul.addr %s280, 32
      %s282 = smul.addr %s281, 8
      %s283 = scalar_lea.vmem %s6, %s282
      %p284 = scmp.lt.s32.totalorder %s21, 1
      %s285 = scalar_select %p284, %s21, 1
      %s286 = smul.addr %s285, 32
      %s287 = smul.addr %s286, 8
      %s288 = scalar_lea.vmem %s0, %s287
      %p289 = scmp.lt.s32.totalorder %s22, 3
      %s290 = scalar_select %p289, %s22, 3
      %s291 = smul.addr %s290, 4
      %s292 = smul.addr %s291, 4
      %s293 = scalar_lea.vmem %s1, %s292
      %p294 = scmp.lt.s32.totalorder %s22, 3
      %s295 = scalar_select %p294, %s22, 3
      %s296 = smul.addr %s295, 4
      %s297 = smul.addr %s296, 4
      %s298 = scalar_lea.vmem %s2, %s297
      %p299 = scmp.lt.s32.totalorder %s21, 1
      %s300 = scalar_select %p299, %s21, 1
      %s301 = smul.addr %s300, 32
      %s302 = smul.addr %s301, 8
      %s303 = scalar_lea.vmem %s6, %s302
      %p305 = scmp.eq.s32.totalorder %s22, 0
      // Predicated region
      $region45: #{tpu_custom_call.1} parent=43 // pred_check
        %p306 = pneg %p305
      $region46: #{tpu_custom_call.1} parent=43 // pred_check_branch
        %308 = sbr.rel (%p306) target = $region48
      $region47: #{tpu_custom_call.1} parent=43 // pred_region
        %vm309 = vcmask 261120
        %310 = vst.msk [vmem:[#allocation2] sm:$0xff] %vm309, 0.0
        %311 = vst.msk [vmem:[#allocation2 + $0x8] sm:$0xff] %vm309, 0.0
        %312 = vst.msk [vmem:[#allocation2 + $0x10] sm:$0xff] %vm309, 0.0
        %313 = vst.msk [vmem:[#allocation2 + $0x18] sm:$0xff] %vm309, 0.0
        %314 = vst.msk [vmem:[#allocation2 + $0x20] sm:$0xff] %vm309, 0.0
        %315 = vst.msk [vmem:[#allocation2 + $0x28] sm:$0xff] %vm309, 0.0
        %316 = vst.msk [vmem:[#allocation2 + $0x30] sm:$0xff] %vm309, 0.0
        %317 = vst.msk [vmem:[#allocation2 + $0x38] sm:$0xff] %vm309, 0.0
        %318 = vst.msk [vmem:[#allocation2 + $0x40] sm:$0xff] %vm309, 0.0
        %319 = vst.msk [vmem:[#allocation2 + $0x48] sm:$0xff] %vm309, 0.0
        %320 = vst.msk [vmem:[#allocation2 + $0x50] sm:$0xff] %vm309, 0.0
        %321 = vst.msk [vmem:[#allocation2 + $0x58] sm:$0xff] %vm309, 0.0
        %322 = vst.msk [vmem:[#allocation2 + $0x60] sm:$0xff] %vm309, 0.0
        %323 = vst.msk [vmem:[#allocation2 + $0x68] sm:$0xff] %vm309, 0.0
        %324 = vst.msk [vmem:[#allocation2 + $0x70] sm:$0xff] %vm309, 0.0
        %325 = vst.msk [vmem:[#allocation2 + $0x78] sm:$0xff] %vm309, 0.0
        %326 = vst.msk [vmem:[#allocation2 + $0x80] sm:$0xff] %vm309, 0.0
        %327 = vst.msk [vmem:[#allocation2 + $0x88] sm:$0xff] %vm309, 0.0
        %328 = vst.msk [vmem:[#allocation2 + $0x90] sm:$0xff] %vm309, 0.0
        %329 = vst.msk [vmem:[#allocation2 + $0x98] sm:$0xff] %vm309, 0.0
        %330 = vst.msk [vmem:[#allocation2 + $0xa0] sm:$0xff] %vm309, 0.0
        %331 = vst.msk [vmem:[#allocation2 + $0xa8] sm:$0xff] %vm309, 0.0
        %332 = vst.msk [vmem:[#allocation2 + $0xb0] sm:$0xff] %vm309, 0.0
        %333 = vst.msk [vmem:[#allocation2 + $0xb8] sm:$0xff] %vm309, 0.0
        %334 = vst.msk [vmem:[#allocation2 + $0xc0] sm:$0xff] %vm309, 0.0
        %335 = vst.msk [vmem:[#allocation2 + $0xc8] sm:$0xff] %vm309, 0.0
        %336 = vst.msk [vmem:[#allocation2 + $0xd0] sm:$0xff] %vm309, 0.0
        %337 = vst.msk [vmem:[#allocation2 + $0xd8] sm:$0xff] %vm309, 0.0
        %338 = vst.msk [vmem:[#allocation2 + $0xe0] sm:$0xff] %vm309, 0.0
        %339 = vst.msk [vmem:[#allocation2 + $0xe8] sm:$0xff] %vm309, 0.0
        %340 = vst.msk [vmem:[#allocation2 + $0xf0] sm:$0xff] %vm309, 0.0
        %341 = vst.msk [vmem:[#allocation2 + $0xf8] sm:$0xff] %vm309, 0.0
      $region48: #{tpu_custom_call.1} parent=43 // pred_fallthru
        _
      %v342 = vld [vmem:[%s288] sm:$0xff]
      %v343 = vld [vmem:[%s288 + $0x8] sm:$0xff]
      %v344 = vld [vmem:[%s288 + $0x10] sm:$0xff]
      %v345 = vld [vmem:[%s288 + $0x18] sm:$0xff]
      %v346 = vld [vmem:[%s288 + $0x20] sm:$0xff]
      %v347 = vld [vmem:[%s288 + $0x28] sm:$0xff]
      %v348 = vld [vmem:[%s288 + $0x30] sm:$0xff]
      %v349 = vld [vmem:[%s288 + $0x38] sm:$0xff]
      %v350 = vld [vmem:[%s288 + $0x40] sm:$0xff]
      %v351 = vld [vmem:[%s288 + $0x48] sm:$0xff]
      %v352 = vld [vmem:[%s288 + $0x50] sm:$0xff]
      %v353 = vld [vmem:[%s288 + $0x58] sm:$0xff]
      %v354 = vld [vmem:[%s288 + $0x60] sm:$0xff]
      %v355 = vld [vmem:[%s288 + $0x68] sm:$0xff]
      %v356 = vld [vmem:[%s288 + $0x70] sm:$0xff]
      %v357 = vld [vmem:[%s288 + $0x78] sm:$0xff]
      %v358 = vld [vmem:[%s288 + $0x80] sm:$0xff]
      %v359 = vld [vmem:[%s288 + $0x88] sm:$0xff]
      %v360 = vld [vmem:[%s288 + $0x90] sm:$0xff]
      %v361 = vld [vmem:[%s288 + $0x98] sm:$0xff]
      %v362 = vld [vmem:[%s288 + $0xa0] sm:$0xff]
      %v363 = vld [vmem:[%s288 + $0xa8] sm:$0xff]
      %v364 = vld [vmem:[%s288 + $0xb0] sm:$0xff]
      %v365 = vld [vmem:[%s288 + $0xb8] sm:$0xff]
      %v366 = vld [vmem:[%s288 + $0xc0] sm:$0xff]
      %v367 = vld [vmem:[%s288 + $0xc8] sm:$0xff]
      %v368 = vld [vmem:[%s288 + $0xd0] sm:$0xff]
      %v369 = vld [vmem:[%s288 + $0xd8] sm:$0xff]
      %v370 = vld [vmem:[%s288 + $0xe0] sm:$0xff]
      %v371 = vld [vmem:[%s288 + $0xe8] sm:$0xff]
      %v372 = vld [vmem:[%s288 + $0xf0] sm:$0xff]
      %v373 = vld [vmem:[%s288 + $0xf8] sm:$0xff]
      %v374 = vpack.c.bf16 %v343, %v342
      %v375 = vpack.c.bf16 %v345, %v344
      %v376 = vpack.c.bf16 %v347, %v346
      %v377 = vpack.c.bf16 %v349, %v348
      %v378 = vpack.c.bf16 %v351, %v350
      %v379 = vpack.c.bf16 %v353, %v352
      %v380 = vpack.c.bf16 %v355, %v354
      %v381 = vpack.c.bf16 %v357, %v356
      %v382 = vpack.c.bf16 %v359, %v358
      %v383 = vpack.c.bf16 %v361, %v360
      %v384 = vpack.c.bf16 %v363, %v362
      %v385 = vpack.c.bf16 %v365, %v364
      %v386 = vpack.c.bf16 %v367, %v366
      %v387 = vpack.c.bf16 %v369, %v368
      %v388 = vpack.c.bf16 %v371, %v370
      %v389 = vpack.c.bf16 %v373, %v372
      %v390 = vld [vmem:[%s293] sm:$0xf]
      %v391 = vld [vmem:[%s293 + $0x4] sm:$0xf]
      %v392 = vld [vmem:[%s293 + $0x8] sm:$0xf]
      %v393 = vld [vmem:[%s293 + $0xc] sm:$0xf]
      %v398 = vunpack.c.l.b16 %v390
      %v399 = vunpack.c.l.b16 %v391
      %v400 = vunpack.c.l.b16 %v392
      %v401 = vunpack.c.l.b16 %v393
      %v402 = vpack.c.b16 %v399, %v398
      %v403 = vpack.c.b16 %v401, %v400
      %vm406 = vcmask 261120
      %v408 = vsel %vm406, %v374, 0
      %v411 = vsel %vm406, %v375, 0
      %v414 = vsel %vm406, %v376, 0
      %v417 = vsel %vm406, %v377, 0
      %v420 = vsel %vm406, %v378, 0
      %v423 = vsel %vm406, %v379, 0
      %v426 = vsel %vm406, %v380, 0
      %v429 = vsel %vm406, %v381, 0
      %v432 = vsel %vm406, %v382, 0
      %v435 = vsel %vm406, %v383, 0
      %v438 = vsel %vm406, %v384, 0
      %v441 = vsel %vm406, %v385, 0
      %v444 = vsel %vm406, %v386, 0
      %v447 = vsel %vm406, %v387, 0
      %v450 = vsel %vm406, %v388, 0
      %v453 = vsel %vm406, %v389, 0
      %455 = vmatprep.subr.bf16.mxu0 0
      %456 = vmatpush1.bf16.msra.mxu0 %v402
      %457 = vmatprep.subr.bf16.mxu0 0
      %458 = vmatpush1.bf16.msra.mxu0 %v403
      %459 = vmatprep.subr.bf16.mxu0 0
      %460 = vmatpush1.bf16.msra.mxu0 0
      %461 = vmatprep.subr.bf16.mxu0 0
      %462 = vmatpush1.bf16.msra.mxu0 0
      %463 = vmatprep.subr.bf16.mxu0 0
      %464 = vmatpush1.bf16.msra.mxu0 0
      %465 = vmatprep.subr.bf16.mxu0 0
      %466 = vmatpush1.bf16.msra.mxu0 0
      %467 = vmatprep.subr.bf16.mxu0 0
      %468 = vmatpush1.bf16.msra.mxu0 0
      %469 = vmatprep.subr.bf16.mxu0 0
      %470 = vmatpush1.bf16.msra.mxu0 0
      %471 = vmatprep.subr.bf16.mxu0 0
      %472 = vmatpush1.bf16.msra.mxu0 0
      %473 = vmatprep.subr.bf16.mxu0 0
      %474 = vmatpush1.bf16.msra.mxu0 0
      %475 = vmatprep.subr.bf16.mxu0 0
      %476 = vmatpush1.bf16.msra.mxu0 0
      %477 = vmatprep.subr.bf16.mxu0 0
      %478 = vmatpush1.bf16.msra.mxu0 0
      %479 = vmatprep.subr.bf16.mxu0 0
      %480 = vmatpush1.bf16.msra.mxu0 0
      %481 = vmatprep.subr.bf16.mxu0 0
      %482 = vmatpush1.bf16.msra.mxu0 0
      %483 = vmatprep.subr.bf16.mxu0 0
      %484 = vmatpush1.bf16.msra.mxu0 0
      %485 = vmatprep.subr.bf16.mxu0 0
      %486 = vmatpush1.bf16.msra.mxu0 0
      %487 = vmatprep.mubr.bf16.mxu0 0
      %488 = vmatmul.mubr.bf16.gmra.mrb[0].mxu0 %v408
      %v489 = vpop.f32.mrb[0].mxu0
      %v490 = vadd.f32 0.0, %v489
      %v491 = vpop.f32.mrb[0].mxu0
      %v492 = vpop.f32.mrb[0].mxu0
      %v493 = vadd.f32 0.0, %v492
      %v494 = vpop.f32.mrb[0].mxu0
      %495 = vmatprep.mubr.bf16.mxu0 0
      %496 = vmatmul.mubr.bf16.gmra.mrb[0].mxu0 %v411
      %v497 = vpop.f32.mrb[0].mxu0
      %v498 = vadd.f32 0.0, %v497
      %v499 = vpop.f32.mrb[0].mxu0
      %v500 = vpop.f32.mrb[0].mxu0
      %v501 = vadd.f32 0.0, %v500
      %v502 = vpop.f32.mrb[0].mxu0
      %503 = vmatprep.mubr.bf16.mxu0 0
      %504 = vmatmul.mubr.bf16.gmra.mrb[0].mxu0 %v414
      %v505 = vpop.f32.mrb[0].mxu0
      %v506 = vadd.f32 0.0, %v505
      %v507 = vpop.f32.mrb[0].mxu0
      %v508 = vpop.f32.mrb[0].mxu0
      %v509 = vadd.f32 0.0, %v508
      %v510 = vpop.f32.mrb[0].mxu0
      %511 = vmatprep.mubr.bf16.mxu0 0
      %512 = vmatmul.mubr.bf16.gmra.mrb[0].mxu0 %v417
      %v513 = vpop.f32.mrb[0].mxu0
      %v514 = vadd.f32 0.0, %v513
      %v515 = vpop.f32.mrb[0].mxu0
      %v516 = vpop.f32.mrb[0].mxu0
      %v517 = vadd.f32 0.0, %v516
      %v518 = vpop.f32.mrb[0].mxu0
      %519 = vmatprep.mubr.bf16.mxu0 0
      %520 = vmatmul.mubr.bf16.gmra.mrb[0].mxu0 %v420
      %v521 = vpop.f32.mrb[0].mxu0
      %v522 = vadd.f32 0.0, %v521
      %v523 = vpop.f32.mrb[0].mxu0
      %v524 = vpop.f32.mrb[0].mxu0
      %v525 = vadd.f32 0.0, %v524
      %v526 = vpop.f32.mrb[0].mxu0
      %527 = vmatprep.mubr.bf16.mxu0 0
      %528 = vmatmul.mubr.bf16.gmra.mrb[0].mxu0 %v423
      %v529 = vpop.f32.mrb[0].mxu0
      %v530 = vadd.f32 0.0, %v529
      %v531 = vpop.f32.mrb[0].mxu0
      %v532 = vpop.f32.mrb[0].mxu0
      %v533 = vadd.f32 0.0, %v532
      %v534 = vpop.f32.mrb[0].mxu0
      %535 = vmatprep.mubr.bf16.mxu0 0
      %536 = vmatmul.mubr.bf16.gmra.mrb[0].mxu0 %v426
      %v537 = vpop.f32.mrb[0].mxu0
      %v538 = vadd.f32 0.0, %v537
      %v539 = vpop.f32.mrb[0].mxu0
      %v540 = vpop.f32.mrb[0].mxu0
      %v541 = vadd.f32 0.0, %v540
      %v542 = vpop.f32.mrb[0].mxu0
      %543 = vmatprep.mubr.bf16.mxu0 0
      %544 = vmatmul.mubr.bf16.gmra.mrb[0].mxu0 %v429
      %v545 = vpop.f32.mrb[0].mxu0
      %v546 = vadd.f32 0.0, %v545
      %v547 = vpop.f32.mrb[0].mxu0
      %v548 = vpop.f32.mrb[0].mxu0
      %v549 = vadd.f32 0.0, %v548
      %v550 = vpop.f32.mrb[0].mxu0
      %551 = vmatprep.mubr.bf16.mxu0 0
      %552 = vmatmul.mubr.bf16.gmra.mrb[0].mxu0 %v432
      %v553 = vpop.f32.mrb[0].mxu0
      %v554 = vadd.f32 0.0, %v553
      %v555 = vpop.f32.mrb[0].mxu0
      %v556 = vpop.f32.mrb[0].mxu0
      %v557 = vadd.f32 0.0, %v556
      %v558 = vpop.f32.mrb[0].mxu0
      %559 = vmatprep.mubr.bf16.mxu0 0
      %560 = vmatmul.mubr.bf16.gmra.mrb[0].mxu0 %v435
      %v561 = vpop.f32.mrb[0].mxu0
      %v562 = vadd.f32 0.0, %v561
      %v563 = vpop.f32.mrb[0].mxu0
      %v564 = vpop.f32.mrb[0].mxu0
      %v565 = vadd.f32 0.0, %v564
      %v566 = vpop.f32.mrb[0].mxu0
      %567 = vmatprep.mubr.bf16.mxu0 0
      %568 = vmatmul.mubr.bf16.gmra.mrb[0].mxu0 %v438
      %v569 = vpop.f32.mrb[0].mxu0
      %v570 = vadd.f32 0.0, %v569
      %v571 = vpop.f32.mrb[0].mxu0
      %v572 = vpop.f32.mrb[0].mxu0
      %v573 = vadd.f32 0.0, %v572
      %v574 = vpop.f32.mrb[0].mxu0
      %575 = vmatprep.mubr.bf16.mxu0 0
      %576 = vmatmul.mubr.bf16.gmra.mrb[0].mxu0 %v441
      %v577 = vpop.f32.mrb[0].mxu0
      %v578 = vadd.f32 0.0, %v577
      %v579 = vpop.f32.mrb[0].mxu0
      %v580 = vpop.f32.mrb[0].mxu0
      %v581 = vadd.f32 0.0, %v580
      %v582 = vpop.f32.mrb[0].mxu0
      %583 = vmatprep.mubr.bf16.mxu0 0
      %584 = vmatmul.mubr.bf16.gmra.mrb[0].mxu0 %v444
      %v585 = vpop.f32.mrb[0].mxu0
      %v586 = vadd.f32 0.0, %v585
      %v587 = vpop.f32.mrb[0].mxu0
      %v588 = vpop.f32.mrb[0].mxu0
      %v589 = vadd.f32 0.0, %v588
      %v590 = vpop.f32.mrb[0].mxu0
      %591 = vmatprep.mubr.bf16.mxu0 0
      %592 = vmatmul.mubr.bf16.gmra.mrb[0].mxu0 %v447
      %v593 = vpop.f32.mrb[0].mxu0
      %v594 = vadd.f32 0.0, %v593
      %v595 = vpop.f32.mrb[0].mxu0
      %v596 = vpop.f32.mrb[0].mxu0
      %v597 = vadd.f32 0.0, %v596
      %v598 = vpop.f32.mrb[0].mxu0
      %599 = vmatprep.mubr.bf16.mxu0 0
      %600 = vmatmul.mubr.bf16.gmra.mrb[0].mxu0 %v450
      %v601 = vpop.f32.mrb[0].mxu0
      %v602 = vadd.f32 0.0, %v601
      %v603 = vpop.f32.mrb[0].mxu0
      %v604 = vpop.f32.mrb[0].mxu0
      %v605 = vadd.f32 0.0, %v604
      %v606 = vpop.f32.mrb[0].mxu0
      %607 = vmatprep.mubr.bf16.mxu0 0
      %608 = vmatmul.mubr.bf16.gmra.mrb[0].mxu0 %v453
      %v609 = vpop.f32.mrb[0].mxu0
      %v610 = vadd.f32 0.0, %v609
      %v611 = vpop.f32.mrb[0].mxu0
      %v612 = vpop.f32.mrb[0].mxu0
      %v613 = vadd.f32 0.0, %v612
      %v614 = vpop.f32.mrb[0].mxu0
      %615 = vdwg.mxu0
      %v616 = vld [vmem:[%s298] sm:$0xf]
      %v617 = vld [vmem:[%s298 + $0x4] sm:$0xf]
      %v618 = vld [vmem:[%s298 + $0x8] sm:$0xf]
      %v619 = vld [vmem:[%s298 + $0xc] sm:$0xf]
      %v624 = vunpack.c.l.b16 %v616
      %v625 = vunpack.c.l.b16 %v617
      %v626 = vunpack.c.l.b16 %v618
      %v627 = vunpack.c.l.b16 %v619
      %v628 = vpack.c.b16 %v625, %v624
      %v629 = vpack.c.b16 %v627, %v626
      %632 = vmatprep.subr.bf16.mxu0 0
      %633 = vmatpush1.bf16.msra.mxu0 %v628
      %634 = vmatprep.subr.bf16.mxu0 0
      %635 = vmatpush1.bf16.msra.mxu0 %v629
      %636 = vmatprep.subr.bf16.mxu0 0
      %637 = vmatpush1.bf16.msra.mxu0 0
      %638 = vmatprep.subr.bf16.mxu0 0
      %639 = vmatpush1.bf16.msra.mxu0 0
      %640 = vmatprep.subr.bf16.mxu0 0
      %641 = vmatpush1.bf16.msra.mxu0 0
      %642 = vmatprep.subr.bf16.mxu0 0
      %643 = vmatpush1.bf16.msra.mxu0 0
      %644 = vmatprep.subr.bf16.mxu0 0
      %645 = vmatpush1.bf16.msra.mxu0 0
      %646 = vmatprep.subr.bf16.mxu0 0
      %647 = vmatpush1.bf16.msra.mxu0 0
      %648 = vmatprep.subr.bf16.mxu0 0
      %649 = vmatpush1.bf16.msra.mxu0 0
      %650 = vmatprep.subr.bf16.mxu0 0
      %651 = vmatpush1.bf16.msra.mxu0 0
      %652 = vmatprep.subr.bf16.mxu0 0
      %653 = vmatpush1.bf16.msra.mxu0 0
      %654 = vmatprep.subr.bf16.mxu0 0
      %655 = vmatpush1.bf16.msra.mxu0 0
      %656 = vmatprep.subr.bf16.mxu0 0
      %657 = vmatpush1.bf16.msra.mxu0 0
      %658 = vmatprep.subr.bf16.mxu0 0
      %659 = vmatpush1.bf16.msra.mxu0 0
      %660 = vmatprep.subr.bf16.mxu0 0
      %661 = vmatpush1.bf16.msra.mxu0 0
      %662 = vmatprep.subr.bf16.mxu0 0
      %663 = vmatpush1.bf16.msra.mxu0 0
      %664 = vmatprep.mubr.bf16.mxu0 0
      %665 = vmatmul.mubr.bf16.gmra.mrb[0].mxu0 %v408
      %v666 = vpop.f32.mrb[0].mxu0
      %v667 = vadd.f32 0.0, %v666
      %v668 = vpop.f32.mrb[0].mxu0
      %v669 = vpop.f32.mrb[0].mxu0
      %v670 = vadd.f32 0.0, %v669
      %v671 = vpop.f32.mrb[0].mxu0
      %672 = vmatprep.mubr.bf16.mxu0 0
      %673 = vmatmul.mubr.bf16.gmra.mrb[0].mxu0 %v411
      %v674 = vpop.f32.mrb[0].mxu0
      %v675 = vadd.f32 0.0, %v674
      %v676 = vpop.f32.mrb[0].mxu0
      %v677 = vpop.f32.mrb[0].mxu0
      %v678 = vadd.f32 0.0, %v677
      %v679 = vpop.f32.mrb[0].mxu0
      %680 = vmatprep.mubr.bf16.mxu0 0
      %681 = vmatmul.mubr.bf16.gmra.mrb[0].mxu0 %v414
      %v682 = vpop.f32.mrb[0].mxu0
      %v683 = vadd.f32 0.0, %v682
      %v684 = vpop.f32.mrb[0].mxu0
      %v685 = vpop.f32.mrb[0].mxu0
      %v686 = vadd.f32 0.0, %v685
      %v687 = vpop.f32.mrb[0].mxu0
      %688 = vmatprep.mubr.bf16.mxu0 0
      %689 = vmatmul.mubr.bf16.gmra.mrb[0].mxu0 %v417
      %v690 = vpop.f32.mrb[0].mxu0
      %v691 = vadd.f32 0.0, %v690
      %v692 = vpop.f32.mrb[0].mxu0
      %v693 = vpop.f32.mrb[0].mxu0
      %v694 = vadd.f32 0.0, %v693
      %v695 = vpop.f32.mrb[0].mxu0
      %696 = vmatprep.mubr.bf16.mxu0 0
      %697 = vmatmul.mubr.bf16.gmra.mrb[0].mxu0 %v420
      %v698 = vpop.f32.mrb[0].mxu0
      %v699 = vadd.f32 0.0, %v698
      %v700 = vpop.f32.mrb[0].mxu0
      %v701 = vpop.f32.mrb[0].mxu0
      %v702 = vadd.f32 0.0, %v701
      %v703 = vpop.f32.mrb[0].mxu0
      %704 = vmatprep.mubr.bf16.mxu0 0
      %705 = vmatmul.mubr.bf16.gmra.mrb[0].mxu0 %v423
      %v706 = vpop.f32.mrb[0].mxu0
      %v707 = vadd.f32 0.0, %v706
      %v708 = vpop.f32.mrb[0].mxu0
      %v709 = vpop.f32.mrb[0].mxu0
      %v710 = vadd.f32 0.0, %v709
      %v711 = vpop.f32.mrb[0].mxu0
      %712 = vmatprep.mubr.bf16.mxu0 0
      %713 = vmatmul.mubr.bf16.gmra.mrb[0].mxu0 %v426
      %v714 = vpop.f32.mrb[0].mxu0
      %v715 = vadd.f32 0.0, %v714
      %v716 = vpop.f32.mrb[0].mxu0
      %v717 = vpop.f32.mrb[0].mxu0
      %v718 = vadd.f32 0.0, %v717
      %v719 = vpop.f32.mrb[0].mxu0
      %720 = vmatprep.mubr.bf16.mxu0 0
      %721 = vmatmul.mubr.bf16.gmra.mrb[0].mxu0 %v429
      %v722 = vpop.f32.mrb[0].mxu0
      %v723 = vadd.f32 0.0, %v722
      %v724 = vpop.f32.mrb[0].mxu0
      %v725 = vpop.f32.mrb[0].mxu0
      %v726 = vadd.f32 0.0, %v725
      %v727 = vpop.f32.mrb[0].mxu0
      %728 = vmatprep.mubr.bf16.mxu0 0
      %729 = vmatmul.mubr.bf16.gmra.mrb[0].mxu0 %v432
      %v730 = vpop.f32.mrb[0].mxu0
      %v731 = vadd.f32 0.0, %v730
      %v732 = vpop.f32.mrb[0].mxu0
      %v733 = vpop.f32.mrb[0].mxu0
      %v734 = vadd.f32 0.0, %v733
      %v735 = vpop.f32.mrb[0].mxu0
      %736 = vmatprep.mubr.bf16.mxu0 0
      %737 = vmatmul.mubr.bf16.gmra.mrb[0].mxu0 %v435
      %v738 = vpop.f32.mrb[0].mxu0
      %v739 = vadd.f32 0.0, %v738
      %v740 = vpop.f32.mrb[0].mxu0
      %v741 = vpop.f32.mrb[0].mxu0
      %v742 = vadd.f32 0.0, %v741
      %v743 = vpop.f32.mrb[0].mxu0
      %744 = vmatprep.mubr.bf16.mxu0 0
      %745 = vmatmul.mubr.bf16.gmra.mrb[0].mxu0 %v438
      %v746 = vpop.f32.mrb[0].mxu0
      %v747 = vadd.f32 0.0, %v746
      %v748 = vpop.f32.mrb[0].mxu0
      %v749 = vpop.f32.mrb[0].mxu0
      %v750 = vadd.f32 0.0, %v749
      %v751 = vpop.f32.mrb[0].mxu0
      %752 = vmatprep.mubr.bf16.mxu0 0
      %753 = vmatmul.mubr.bf16.gmra.mrb[0].mxu0 %v441
      %v754 = vpop.f32.mrb[0].mxu0
      %v755 = vadd.f32 0.0, %v754
      %v756 = vpop.f32.mrb[0].mxu0
      %v757 = vpop.f32.mrb[0].mxu0
      %v758 = vadd.f32 0.0, %v757
      %v759 = vpop.f32.mrb[0].mxu0
      %760 = vmatprep.mubr.bf16.mxu0 0
      %761 = vmatmul.mubr.bf16.gmra.mrb[0].mxu0 %v444
      %v762 = vpop.f32.mrb[0].mxu0
      %v763 = vadd.f32 0.0, %v762
      %v764 = vpop.f32.mrb[0].mxu0
      %v765 = vpop.f32.mrb[0].mxu0
      %v766 = vadd.f32 0.0, %v765
      %v767 = vpop.f32.mrb[0].mxu0
      %768 = vmatprep.mubr.bf16.mxu0 0
      %769 = vmatmul.mubr.bf16.gmra.mrb[0].mxu0 %v447
      %v770 = vpop.f32.mrb[0].mxu0
      %v771 = vadd.f32 0.0, %v770
      %v772 = vpop.f32.mrb[0].mxu0
      %v773 = vpop.f32.mrb[0].mxu0
      %v774 = vadd.f32 0.0, %v773
      %v775 = vpop.f32.mrb[0].mxu0
      %776 = vmatprep.mubr.bf16.mxu0 0
      %777 = vmatmul.mubr.bf16.gmra.mrb[0].mxu0 %v450
      %v778 = vpop.f32.mrb[0].mxu0
      %v779 = vadd.f32 0.0, %v778
      %v780 = vpop.f32.mrb[0].mxu0
      %v781 = vpop.f32.mrb[0].mxu0
      %v782 = vadd.f32 0.0, %v781
      %v783 = vpop.f32.mrb[0].mxu0
      %784 = vmatprep.mubr.bf16.mxu0 0
      %785 = vmatmul.mubr.bf16.gmra.mrb[0].mxu0 %v453
      %v786 = vpop.f32.mrb[0].mxu0
      %v787 = vadd.f32 0.0, %v786
      %v788 = vpop.f32.mrb[0].mxu0
      %v789 = vpop.f32.mrb[0].mxu0
      %v790 = vadd.f32 0.0, %v789
      %v791 = vpop.f32.mrb[0].mxu0
      %792 = vdwg.mxu0
      %v793 = vld [vmem:[%s3] sm:$0xff]
      %v794 = vld [vmem:[%s3 + $0x8] sm:$0xff]
      %v795 = vld [vmem:[%s3 + $0x10] sm:$0xff]
      %v796 = vld [vmem:[%s3 + $0x18] sm:$0xff]
      %v797 = vld [vmem:[%s3 + $0x20] sm:$0xff]
      %v798 = vld [vmem:[%s3 + $0x28] sm:$0xff]
      %v799 = vld [vmem:[%s3 + $0x30] sm:$0xff]
      %v800 = vld [vmem:[%s3 + $0x38] sm:$0xff]
      %v801 = vld [vmem:[%s3 + $0x40] sm:$0xff]
      %v802 = vld [vmem:[%s3 + $0x48] sm:$0xff]
      %v803 = vld [vmem:[%s3 + $0x50] sm:$0xff]
      %v804 = vld [vmem:[%s3 + $0x58] sm:$0xff]
      %v805 = vld [vmem:[%s3 + $0x60] sm:$0xff]
      %v806 = vld [vmem:[%s3 + $0x68] sm:$0xff]
      %v807 = vld [vmem:[%s3 + $0x70] sm:$0xff]
      %v808 = vld [vmem:[%s3 + $0x78] sm:$0xff]
      %v809 = vld [vmem:[%s3 + $0x80] sm:$0xff]
      %v810 = vld [vmem:[%s3 + $0x88] sm:$0xff]
      %v811 = vld [vmem:[%s3 + $0x90] sm:$0xff]
      %v812 = vld [vmem:[%s3 + $0x98] sm:$0xff]
      %v813 = vld [vmem:[%s3 + $0xa0] sm:$0xff]
      %v814 = vld [vmem:[%s3 + $0xa8] sm:$0xff]
      %v815 = vld [vmem:[%s3 + $0xb0] sm:$0xff]
      %v816 = vld [vmem:[%s3 + $0xb8] sm:$0xff]
      %v817 = vld [vmem:[%s3 + $0xc0] sm:$0xff]
      %v818 = vld [vmem:[%s3 + $0xc8] sm:$0xff]
      %v819 = vld [vmem:[%s3 + $0xd0] sm:$0xff]
      %v820 = vld [vmem:[%s3 + $0xd8] sm:$0xff]
      %v821 = vld [vmem:[%s3 + $0xe0] sm:$0xff]
      %v822 = vld [vmem:[%s3 + $0xe8] sm:$0xff]
      %v823 = vld [vmem:[%s3 + $0xf0] sm:$0xff]
      %v824 = vld [vmem:[%s3 + $0xf8] sm:$0xff]
      %v825 = vmul.f32 %v490, %v793
      %v826 = vmul.f32 %v493, %v794
      %v827 = vmul.f32 %v498, %v795
      %v828 = vmul.f32 %v501, %v796
      %v829 = vmul.f32 %v506, %v797
      %v830 = vmul.f32 %v509, %v798
      %v831 = vmul.f32 %v514, %v799
      %v832 = vmul.f32 %v517, %v800
      %v833 = vmul.f32 %v522, %v801
      %v834 = vmul.f32 %v525, %v802
      %v835 = vmul.f32 %v530, %v803
      %v836 = vmul.f32 %v533, %v804
      %v837 = vmul.f32 %v538, %v805
      %v838 = vmul.f32 %v541, %v806
      %v839 = vmul.f32 %v546, %v807
      %v840 = vmul.f32 %v549, %v808
      %v841 = vmul.f32 %v554, %v809
      %v842 = vmul.f32 %v557, %v810
      %v843 = vmul.f32 %v562, %v811
      %v844 = vmul.f32 %v565, %v812
      %v845 = vmul.f32 %v570, %v813
      %v846 = vmul.f32 %v573, %v814
      %v847 = vmul.f32 %v578, %v815
      %v848 = vmul.f32 %v581, %v816
      %v849 = vmul.f32 %v586, %v817
      %v850 = vmul.f32 %v589, %v818
      %v851 = vmul.f32 %v594, %v819
      %v852 = vmul.f32 %v597, %v820
      %v853 = vmul.f32 %v602, %v821
      %v854 = vmul.f32 %v605, %v822
      %v855 = vmul.f32 %v610, %v823
      %v856 = vmul.f32 %v613, %v824
      %v857 = vld [vmem:[%s4] sm:$0xff]
      %v858 = vld [vmem:[%s4 + $0x8] sm:$0xff]
      %v859 = vld [vmem:[%s4 + $0x10] sm:$0xff]
      %v860 = vld [vmem:[%s4 + $0x18] sm:$0xff]
      %v861 = vld [vmem:[%s4 + $0x20] sm:$0xff]
      %v862 = vld [vmem:[%s4 + $0x28] sm:$0xff]
      %v863 = vld [vmem:[%s4 + $0x30] sm:$0xff]
      %v864 = vld [vmem:[%s4 + $0x38] sm:$0xff]
      %v865 = vld [vmem:[%s4 + $0x40] sm:$0xff]
      %v866 = vld [vmem:[%s4 + $0x48] sm:$0xff]
      %v867 = vld [vmem:[%s4 + $0x50] sm:$0xff]
      %v868 = vld [vmem:[%s4 + $0x58] sm:$0xff]
      %v869 = vld [vmem:[%s4 + $0x60] sm:$0xff]
      %v870 = vld [vmem:[%s4 + $0x68] sm:$0xff]
      %v871 = vld [vmem:[%s4 + $0x70] sm:$0xff]
      %v872 = vld [vmem:[%s4 + $0x78] sm:$0xff]
      %v873 = vld [vmem:[%s4 + $0x80] sm:$0xff]
      %v874 = vld [vmem:[%s4 + $0x88] sm:$0xff]
      %v875 = vld [vmem:[%s4 + $0x90] sm:$0xff]
      %v876 = vld [vmem:[%s4 + $0x98] sm:$0xff]
      %v877 = vld [vmem:[%s4 + $0xa0] sm:$0xff]
      %v878 = vld [vmem:[%s4 + $0xa8] sm:$0xff]
      %v879 = vld [vmem:[%s4 + $0xb0] sm:$0xff]
      %v880 = vld [vmem:[%s4 + $0xb8] sm:$0xff]
      %v881 = vld [vmem:[%s4 + $0xc0] sm:$0xff]
      %v882 = vld [vmem:[%s4 + $0xc8] sm:$0xff]
      %v883 = vld [vmem:[%s4 + $0xd0] sm:$0xff]
      %v884 = vld [vmem:[%s4 + $0xd8] sm:$0xff]
      %v885 = vld [vmem:[%s4 + $0xe0] sm:$0xff]
      %v886 = vld [vmem:[%s4 + $0xe8] sm:$0xff]
      %v887 = vld [vmem:[%s4 + $0xf0] sm:$0xff]
      %v888 = vld [vmem:[%s4 + $0xf8] sm:$0xff]
      %v889 = vmul.f32 %v667, %v857
      %v890 = vmul.f32 %v670, %v858
      %v891 = vmul.f32 %v675, %v859
      %v892 = vmul.f32 %v678, %v860
      %v893 = vmul.f32 %v683, %v861
      %v894 = vmul.f32 %v686, %v862
      %v895 = vmul.f32 %v691, %v863
      %v896 = vmul.f32 %v694, %v864
      %v897 = vmul.f32 %v699, %v865
      %v898 = vmul.f32 %v702, %v866
      %v899 = vmul.f32 %v707, %v867
      %v900 = vmul.f32 %v710, %v868
      %v901 = vmul.f32 %v715, %v869
      %v902 = vmul.f32 %v718, %v870
      %v903 = vmul.f32 %v723, %v871
      %v904 = vmul.f32 %v726, %v872
      %v905 = vmul.f32 %v731, %v873
      %v906 = vmul.f32 %v734, %v874
      %v907 = vmul.f32 %v739, %v875
      %v908 = vmul.f32 %v742, %v876
      %v909 = vmul.f32 %v747, %v877
      %v910 = vmul.f32 %v750, %v878
      %v911 = vmul.f32 %v755, %v879
      %v912 = vmul.f32 %v758, %v880
      %v913 = vmul.f32 %v763, %v881
      %v914 = vmul.f32 %v766, %v882
      %v915 = vmul.f32 %v771, %v883
      %v916 = vmul.f32 %v774, %v884
      %v917 = vmul.f32 %v779, %v885
      %v918 = vmul.f32 %v782, %v886
      %v919 = vmul.f32 %v787, %v887
      %v920 = vmul.f32 %v790, %v888
      %v921 = vadd.f32 %v825, %v889
      %v922 = vadd.f32 %v826, %v890
      %v923 = vadd.f32 %v827, %v891
      %v924 = vadd.f32 %v828, %v892
      %v925 = vadd.f32 %v829, %v893
      %v926 = vadd.f32 %v830, %v894
      %v927 = vadd.f32 %v831, %v895
      %v928 = vadd.f32 %v832, %v896
      %v929 = vadd.f32 %v833, %v897
      %v930 = vadd.f32 %v834, %v898
      %v931 = vadd.f32 %v835, %v899
      %v932 = vadd.f32 %v836, %v900
      %v933 = vadd.f32 %v837, %v901
      %v934 = vadd.f32 %v838, %v902
      %v935 = vadd.f32 %v839, %v903
      %v936 = vadd.f32 %v840, %v904
      %v937 = vadd.f32 %v841, %v905
      %v938 = vadd.f32 %v842, %v906
      %v939 = vadd.f32 %v843, %v907
      %v940 = vadd.f32 %v844, %v908
      %v941 = vadd.f32 %v845, %v909
      %v942 = vadd.f32 %v846, %v910
      %v943 = vadd.f32 %v847, %v911
      %v944 = vadd.f32 %v848, %v912
      %v945 = vadd.f32 %v849, %v913
      %v946 = vadd.f32 %v850, %v914
      %v947 = vadd.f32 %v851, %v915
      %v948 = vadd.f32 %v852, %v916
      %v949 = vadd.f32 %v853, %v917
      %v950 = vadd.f32 %v854, %v918
      %v951 = vadd.f32 %v855, %v919
      %v952 = vadd.f32 %v856, %v920
      %v953 = vpack.c.bf16 %v922, %v921
      %v954 = vpack.c.bf16 %v924, %v923
      %v955 = vpack.c.bf16 %v926, %v925
      %v956 = vpack.c.bf16 %v928, %v927
      %v957 = vpack.c.bf16 %v930, %v929
      %v958 = vpack.c.bf16 %v932, %v931
      %v959 = vpack.c.bf16 %v934, %v933
      %v960 = vpack.c.bf16 %v936, %v935
      %v961 = vpack.c.bf16 %v938, %v937
      %v962 = vpack.c.bf16 %v940, %v939
      %v963 = vpack.c.bf16 %v942, %v941
      %v964 = vpack.c.bf16 %v944, %v943
      %v965 = vpack.c.bf16 %v946, %v945
      %v966 = vpack.c.bf16 %v948, %v947
      %v967 = vpack.c.bf16 %v950, %v949
      %v968 = vpack.c.bf16 %v952, %v951
      %985 = vrot.lane.b32.xlu0 %v953, 120
      %v986 = vpop.permute.xlu0 %985
      %987 = vrot.lane.b32.xlu0 %v954, 120
      %v988 = vpop.permute.xlu0 %987
      %989 = vrot.lane.b32.xlu0 %v955, 120
      %v990 = vpop.permute.xlu0 %989
      %991 = vrot.lane.b32.xlu0 %v956, 120
      %v992 = vpop.permute.xlu0 %991
      %993 = vrot.lane.b32.xlu0 %v957, 120
      %v994 = vpop.permute.xlu0 %993
      %995 = vrot.lane.b32.xlu0 %v958, 120
      %v996 = vpop.permute.xlu0 %995
      %997 = vrot.lane.b32.xlu0 %v959, 120
      %v998 = vpop.permute.xlu0 %997
      %999 = vrot.lane.b32.xlu0 %v960, 120
      %v1000 = vpop.permute.xlu0 %999
      %1001 = vrot.lane.b32.xlu0 %v961, 120
      %v1002 = vpop.permute.xlu0 %1001
      %1003 = vrot.lane.b32.xlu0 %v962, 120
      %v1004 = vpop.permute.xlu0 %1003
      %1005 = vrot.lane.b32.xlu0 %v963, 120
      %v1006 = vpop.permute.xlu0 %1005
      %1007 = vrot.lane.b32.xlu0 %v964, 120
      %v1008 = vpop.permute.xlu0 %1007
      %1009 = vrot.lane.b32.xlu0 %v965, 120
      %v1010 = vpop.permute.xlu0 %1009
      %1011 = vrot.lane.b32.xlu0 %v966, 120
      %v1012 = vpop.permute.xlu0 %1011
      %1013 = vrot.lane.b32.xlu0 %v967, 120
      %v1014 = vpop.permute.xlu0 %1013
      %1015 = vrot.lane.b32.xlu0 %v968, 120
      %v1016 = vpop.permute.xlu0 %1015
      %vm1017 = vcmask 64512
      %v1019 = vsel %vm1017, %v953, 0
      %v1022 = vsel %vm1017, %v954, 0
      %v1025 = vsel %vm1017, %v955, 0
      %v1028 = vsel %vm1017, %v956, 0
      %v1031 = vsel %vm1017, %v957, 0
      %v1034 = vsel %vm1017, %v958, 0
      %v1037 = vsel %vm1017, %v959, 0
      %v1040 = vsel %vm1017, %v960, 0
      %v1043 = vsel %vm1017, %v961, 0
      %v1046 = vsel %vm1017, %v962, 0
      %v1049 = vsel %vm1017, %v963, 0
      %v1052 = vsel %vm1017, %v964, 0
      %v1055 = vsel %vm1017, %v965, 0
      %v1058 = vsel %vm1017, %v966, 0
      %v1061 = vsel %vm1017, %v967, 0
      %v1064 = vsel %vm1017, %v968, 0
      %v1067 = vsel %vm1017, %v986, 0
      %v1070 = vsel %vm1017, %v988, 0
      %v1073 = vsel %vm1017, %v990, 0
      %v1076 = vsel %vm1017, %v992, 0
      %v1079 = vsel %vm1017, %v994, 0
      %v1082 = vsel %vm1017, %v996, 0
      %v1085 = vsel %vm1017, %v998, 0
      %v1088 = vsel %vm1017, %v1000, 0
      %v1091 = vsel %vm1017, %v1002, 0
      %v1094 = vsel %vm1017, %v1004, 0
      %v1097 = vsel %vm1017, %v1006, 0
      %v1100 = vsel %vm1017, %v1008, 0
      %v1103 = vsel %vm1017, %v1010, 0
      %v1106 = vsel %vm1017, %v1012, 0
      %v1109 = vsel %vm1017, %v1014, 0
      %v1112 = vsel %vm1017, %v1016, 0
      %1114 = vmatprep.subr.bf16.mxu0 0
      %1115 = vmatpush1.bf16.xpose.msra.mxu0 %v1067
      %1116 = vmatprep.subr.bf16.mxu0 0
      %1117 = vmatpush1.bf16.xpose.msra.mxu0 %v1070
      %1118 = vmatprep.subr.bf16.mxu0 0
      %1119 = vmatpush1.bf16.xpose.msra.mxu0 %v1073
      %1120 = vmatprep.subr.bf16.mxu0 0
      %1121 = vmatpush1.bf16.xpose.msra.mxu0 %v1076
      %1122 = vmatprep.subr.bf16.mxu0 0
      %1123 = vmatpush1.bf16.xpose.msra.mxu0 %v1079
      %1124 = vmatprep.subr.bf16.mxu0 0
      %1125 = vmatpush1.bf16.xpose.msra.mxu0 %v1082
      %1126 = vmatprep.subr.bf16.mxu0 0
      %1127 = vmatpush1.bf16.xpose.msra.mxu0 %v1085
      %1128 = vmatprep.subr.bf16.mxu0 0
      %1129 = vmatpush1.bf16.xpose.msra.mxu0 %v1088
      %1130 = vmatprep.subr.bf16.mxu0 0
      %1131 = vmatpush1.bf16.xpose.msra.mxu0 %v1091
      %1132 = vmatprep.subr.bf16.mxu0 0
      %1133 = vmatpush1.bf16.xpose.msra.mxu0 %v1094
      %1134 = vmatprep.subr.bf16.mxu0 0
      %1135 = vmatpush1.bf16.xpose.msra.mxu0 %v1097
      %1136 = vmatprep.subr.bf16.mxu0 0
      %1137 = vmatpush1.bf16.xpose.msra.mxu0 %v1100
      %1138 = vmatprep.subr.bf16.mxu0 0
      %1139 = vmatpush1.bf16.xpose.msra.mxu0 %v1103
      %1140 = vmatprep.subr.bf16.mxu0 0
      %1141 = vmatpush1.bf16.xpose.msra.mxu0 %v1106
      %1142 = vmatprep.subr.bf16.mxu0 0
      %1143 = vmatpush1.bf16.xpose.msra.mxu0 %v1109
      %1144 = vmatprep.subr.bf16.mxu0 0
      %1145 = vmatpush1.bf16.xpose.msra.mxu0 %v1112
      %1146 = vmatprep.mubr.bf16.mxu0 0
      %1147 = vmatmul.mubr.bf16.gmra.mrb[0].mxu0 %v1019
      %v1148 = vpop.f32.mrb[0].mxu0
      %v1149 = vadd.f32 0.0, %v1148
      %v1150 = vpop.f32.mrb[0].mxu0
      %v1151 = vadd.f32 0.0, %v1150
      %v1152 = vpop.f32.mrb[0].mxu0
      %v1153 = vadd.f32 0.0, %v1152
      %v1154 = vpop.f32.mrb[0].mxu0
      %v1155 = vadd.f32 0.0, %v1154
      %1156 = vmatprep.mubr.bf16.mxu0 0
      %1157 = vmatmul.mubr.bf16.gmra.mrb[0].mxu0 %v1022
      %v1158 = vpop.f32.mrb[0].mxu0
      %v1159 = vadd.f32 0.0, %v1158
      %v1160 = vpop.f32.mrb[0].mxu0
      %v1161 = vadd.f32 0.0, %v1160
      %v1162 = vpop.f32.mrb[0].mxu0
      %v1163 = vadd.f32 0.0, %v1162
      %v1164 = vpop.f32.mrb[0].mxu0
      %v1165 = vadd.f32 0.0, %v1164
      %1166 = vmatprep.mubr.bf16.mxu0 0
      %1167 = vmatmul.mubr.bf16.gmra.mrb[0].mxu0 %v1025
      %v1168 = vpop.f32.mrb[0].mxu0
      %v1169 = vadd.f32 0.0, %v1168
      %v1170 = vpop.f32.mrb[0].mxu0
      %v1171 = vadd.f32 0.0, %v1170
      %v1172 = vpop.f32.mrb[0].mxu0
      %v1173 = vadd.f32 0.0, %v1172
      %v1174 = vpop.f32.mrb[0].mxu0
      %v1175 = vadd.f32 0.0, %v1174
      %1176 = vmatprep.mubr.bf16.mxu0 0
      %1177 = vmatmul.mubr.bf16.gmra.mrb[0].mxu0 %v1028
      %v1178 = vpop.f32.mrb[0].mxu0
      %v1179 = vadd.f32 0.0, %v1178
      %v1180 = vpop.f32.mrb[0].mxu0
      %v1181 = vadd.f32 0.0, %v1180
      %v1182 = vpop.f32.mrb[0].mxu0
      %v1183 = vadd.f32 0.0, %v1182
      %v1184 = vpop.f32.mrb[0].mxu0
      %v1185 = vadd.f32 0.0, %v1184
      %1186 = vmatprep.mubr.bf16.mxu0 0
      %1187 = vmatmul.mubr.bf16.gmra.mrb[0].mxu0 %v1031
      %v1188 = vpop.f32.mrb[0].mxu0
      %v1189 = vadd.f32 0.0, %v1188
      %v1190 = vpop.f32.mrb[0].mxu0
      %v1191 = vadd.f32 0.0, %v1190
      %v1192 = vpop.f32.mrb[0].mxu0
      %v1193 = vadd.f32 0.0, %v1192
      %v1194 = vpop.f32.mrb[0].mxu0
      %v1195 = vadd.f32 0.0, %v1194
      %1196 = vmatprep.mubr.bf16.mxu0 0
      %1197 = vmatmul.mubr.bf16.gmra.mrb[0].mxu0 %v1034
      %v1198 = vpop.f32.mrb[0].mxu0
      %v1199 = vadd.f32 0.0, %v1198
      %v1200 = vpop.f32.mrb[0].mxu0
      %v1201 = vadd.f32 0.0, %v1200
      %v1202 = vpop.f32.mrb[0].mxu0
      %v1203 = vadd.f32 0.0, %v1202
      %v1204 = vpop.f32.mrb[0].mxu0
      %v1205 = vadd.f32 0.0, %v1204
      %1206 = vmatprep.mubr.bf16.mxu0 0
      %1207 = vmatmul.mubr.bf16.gmra.mrb[0].mxu0 %v1037
      %v1208 = vpop.f32.mrb[0].mxu0
      %v1209 = vadd.f32 0.0, %v1208
      %v1210 = vpop.f32.mrb[0].mxu0
      %v1211 = vadd.f32 0.0, %v1210
      %v1212 = vpop.f32.mrb[0].mxu0
      %v1213 = vadd.f32 0.0, %v1212
      %v1214 = vpop.f32.mrb[0].mxu0
      %v1215 = vadd.f32 0.0, %v1214
      %1216 = vmatprep.mubr.bf16.mxu0 0
      %1217 = vmatmul.mubr.bf16.gmra.mrb[0].mxu0 %v1040
      %v1218 = vpop.f32.mrb[0].mxu0
      %v1219 = vadd.f32 0.0, %v1218
      %v1220 = vpop.f32.mrb[0].mxu0
      %v1221 = vadd.f32 0.0, %v1220
      %v1222 = vpop.f32.mrb[0].mxu0
      %v1223 = vadd.f32 0.0, %v1222
      %v1224 = vpop.f32.mrb[0].mxu0
      %v1225 = vadd.f32 0.0, %v1224
      %1226 = vmatprep.mubr.bf16.mxu0 0
      %1227 = vmatmul.mubr.bf16.gmra.mrb[0].mxu0 %v1043
      %v1228 = vpop.f32.mrb[0].mxu0
      %v1229 = vadd.f32 0.0, %v1228
      %v1230 = vpop.f32.mrb[0].mxu0
      %v1231 = vadd.f32 0.0, %v1230
      %v1232 = vpop.f32.mrb[0].mxu0
      %v1233 = vadd.f32 0.0, %v1232
      %v1234 = vpop.f32.mrb[0].mxu0
      %v1235 = vadd.f32 0.0, %v1234
      %1236 = vmatprep.mubr.bf16.mxu0 0
      %1237 = vmatmul.mubr.bf16.gmra.mrb[0].mxu0 %v1046
      %v1238 = vpop.f32.mrb[0].mxu0
      %v1239 = vadd.f32 0.0, %v1238
      %v1240 = vpop.f32.mrb[0].mxu0
      %v1241 = vadd.f32 0.0, %v1240
      %v1242 = vpop.f32.mrb[0].mxu0
      %v1243 = vadd.f32 0.0, %v1242
      %v1244 = vpop.f32.mrb[0].mxu0
      %v1245 = vadd.f32 0.0, %v1244
      %1246 = vmatprep.mubr.bf16.mxu0 0
      %1247 = vmatmul.mubr.bf16.gmra.mrb[0].mxu0 %v1049
      %v1248 = vpop.f32.mrb[0].mxu0
      %v1249 = vadd.f32 0.0, %v1248
      %v1250 = vpop.f32.mrb[0].mxu0
      %v1251 = vadd.f32 0.0, %v1250
      %v1252 = vpop.f32.mrb[0].mxu0
      %v1253 = vadd.f32 0.0, %v1252
      %v1254 = vpop.f32.mrb[0].mxu0
      %v1255 = vadd.f32 0.0, %v1254
      %1256 = vmatprep.mubr.bf16.mxu0 0
      %1257 = vmatmul.mubr.bf16.gmra.mrb[0].mxu0 %v1052
      %v1258 = vpop.f32.mrb[0].mxu0
      %v1259 = vadd.f32 0.0, %v1258
      %v1260 = vpop.f32.mrb[0].mxu0
      %v1261 = vadd.f32 0.0, %v1260
      %v1262 = vpop.f32.mrb[0].mxu0
      %v1263 = vadd.f32 0.0, %v1262
      %v1264 = vpop.f32.mrb[0].mxu0
      %v1265 = vadd.f32 0.0, %v1264
      %1266 = vmatprep.mubr.bf16.mxu0 0
      %1267 = vmatmul.mubr.bf16.gmra.mrb[0].mxu0 %v1055
      %v1268 = vpop.f32.mrb[0].mxu0
      %v1269 = vadd.f32 0.0, %v1268
      %v1270 = vpop.f32.mrb[0].mxu0
      %v1271 = vadd.f32 0.0, %v1270
      %v1272 = vpop.f32.mrb[0].mxu0
      %v1273 = vadd.f32 0.0, %v1272
      %v1274 = vpop.f32.mrb[0].mxu0
      %v1275 = vadd.f32 0.0, %v1274
      %1276 = vmatprep.mubr.bf16.mxu0 0
      %1277 = vmatmul.mubr.bf16.gmra.mrb[0].mxu0 %v1058
      %v1278 = vpop.f32.mrb[0].mxu0
      %v1279 = vadd.f32 0.0, %v1278
      %v1280 = vpop.f32.mrb[0].mxu0
      %v1281 = vadd.f32 0.0, %v1280
      %v1282 = vpop.f32.mrb[0].mxu0
      %v1283 = vadd.f32 0.0, %v1282
      %v1284 = vpop.f32.mrb[0].mxu0
      %v1285 = vadd.f32 0.0, %v1284
      %1286 = vmatprep.mubr.bf16.mxu0 0
      %1287 = vmatmul.mubr.bf16.gmra.mrb[0].mxu0 %v1061
      %v1288 = vpop.f32.mrb[0].mxu0
      %v1289 = vadd.f32 0.0, %v1288
      %v1290 = vpop.f32.mrb[0].mxu0
      %v1291 = vadd.f32 0.0, %v1290
      %v1292 = vpop.f32.mrb[0].mxu0
      %v1293 = vadd.f32 0.0, %v1292
      %v1294 = vpop.f32.mrb[0].mxu0
      %v1295 = vadd.f32 0.0, %v1294
      %1296 = vmatprep.mubr.bf16.mxu0 0
      %1297 = vmatmul.mubr.bf16.gmra.mrb[0].mxu0 %v1064
      %v1298 = vpop.f32.mrb[0].mxu0
      %v1299 = vadd.f32 0.0, %v1298
      %v1300 = vpop.f32.mrb[0].mxu0
      %v1301 = vadd.f32 0.0, %v1300
      %v1302 = vpop.f32.mrb[0].mxu0
      %v1303 = vadd.f32 0.0, %v1302
      %v1304 = vpop.f32.mrb[0].mxu0
      %v1305 = vadd.f32 0.0, %v1304
      %1306 = vdwg.mxu0
      %v1307 = vlaneseq
      %v1308 = vshrl.u32 %v1307, 7
      %v1309 = vadd.s32 %v1308, 8
      %v1310 = vadd.s32 %v1308, 16
      %v1311 = vadd.s32 %v1308, 24
      %v1312 = vadd.s32 %v1308, 32
      %v1313 = vadd.s32 %v1308, 40
      %v1314 = vadd.s32 %v1308, 48
      %v1315 = vadd.s32 %v1308, 56
      %v1316 = vadd.s32 %v1308, 64
      %v1317 = vadd.s32 %v1308, 72
      %v1318 = vadd.s32 %v1308, 80
      %v1319 = vadd.s32 %v1308, 88
      %v1320 = vadd.s32 %v1308, 96
      %v1321 = vadd.s32 %v1308, 104
      %v1322 = vadd.s32 %v1308, 112
      %v1323 = vadd.s32 %v1308, 120
      %v1324 = vadd.s32 %v1308, 128
      %v1325 = vadd.s32 %v1308, 136
      %v1326 = vadd.s32 %v1308, 144
      %v1327 = vadd.s32 %v1308, 152
      %v1328 = vadd.s32 %v1308, 160
      %v1329 = vadd.s32 %v1308, 168
      %v1330 = vadd.s32 %v1308, 176
      %v1331 = vadd.s32 %v1308, 184
      %v1332 = vadd.s32 %v1308, 192
      %v1333 = vadd.s32 %v1308, 200
      %v1334 = vadd.s32 %v1308, 208
      %v1335 = vadd.s32 %v1308, 216
      %v1336 = vadd.s32 %v1308, 224
      %v1337 = vadd.s32 %v1308, 232
      %v1338 = vadd.s32 %v1308, 240
      %v1339 = vadd.s32 %v1308, 248
      %v1340 = vlaneseq
      %v1341 = vand.u32 %v1340, 127
      %v1342 = vadd.s32 %v1341, 128
      %vm1343 = vcmp.le.s32.totalorder %v1341, %v1308
      %vm1344 = vcmp.le.s32.totalorder %v1342, %v1308
      %vm1345 = vcmp.le.s32.totalorder %v1341, %v1309
      %vm1346 = vcmp.le.s32.totalorder %v1342, %v1309
      %vm1347 = vcmp.le.s32.totalorder %v1341, %v1310
      %vm1348 = vcmp.le.s32.totalorder %v1342, %v1310
      %vm1349 = vcmp.le.s32.totalorder %v1341, %v1311
      %vm1350 = vcmp.le.s32.totalorder %v1342, %v1311
      %vm1351 = vcmp.le.s32.totalorder %v1341, %v1312
      %vm1352 = vcmp.le.s32.totalorder %v1342, %v1312
      %vm1353 = vcmp.le.s32.totalorder %v1341, %v1313
      %vm1354 = vcmp.le.s32.totalorder %v1342, %v1313
      %vm1355 = vcmp.le.s32.totalorder %v1341, %v1314
      %vm1356 = vcmp.le.s32.totalorder %v1342, %v1314
      %vm1357 = vcmp.le.s32.totalorder %v1341, %v1315
      %vm1358 = vcmp.le.s32.totalorder %v1342, %v1315
      %vm1359 = vcmp.le.s32.totalorder %v1341, %v1316
      %vm1360 = vcmp.le.s32.totalorder %v1342, %v1316
      %vm1361 = vcmp.le.s32.totalorder %v1341, %v1317
      %vm1362 = vcmp.le.s32.totalorder %v1342, %v1317
      %vm1363 = vcmp.le.s32.totalorder %v1341, %v1318
      %vm1364 = vcmp.le.s32.totalorder %v1342, %v1318
      %vm1365 = vcmp.le.s32.totalorder %v1341, %v1319
      %vm1366 = vcmp.le.s32.totalorder %v1342, %v1319
      %vm1367 = vcmp.le.s32.totalorder %v1341, %v1320
      %vm1368 = vcmp.le.s32.totalorder %v1342, %v1320
      %vm1369 = vcmp.le.s32.totalorder %v1341, %v1321
      %vm1370 = vcmp.le.s32.totalorder %v1342, %v1321
      %vm1371 = vcmp.le.s32.totalorder %v1341, %v1322
      %vm1372 = vcmp.le.s32.totalorder %v1342, %v1322
      %vm1373 = vcmp.le.s32.totalorder %v1341, %v1323
      %vm1374 = vcmp.le.s32.totalorder %v1342, %v1323
      %vm1375 = vcmp.le.s32.totalorder %v1341, %v1324
      %vm1376 = vcmp.le.s32.totalorder %v1342, %v1324
      %vm1377 = vcmp.le.s32.totalorder %v1341, %v1325
      %vm1378 = vcmp.le.s32.totalorder %v1342, %v1325
      %vm1379 = vcmp.le.s32.totalorder %v1341, %v1326
      %vm1380 = vcmp.le.s32.totalorder %v1342, %v1326
      %vm1381 = vcmp.le.s32.totalorder %v1341, %v1327
      %vm1382 = vcmp.le.s32.totalorder %v1342, %v1327
      %vm1383 = vcmp.le.s32.totalorder %v1341, %v1328
      %vm1384 = vcmp.le.s32.totalorder %v1342, %v1328
      %vm1385 = vcmp.le.s32.totalorder %v1341, %v1329
      %vm1386 = vcmp.le.s32.totalorder %v1342, %v1329
      %vm1387 = vcmp.le.s32.totalorder %v1341, %v1330
      %vm1388 = vcmp.le.s32.totalorder %v1342, %v1330
      %vm1389 = vcmp.le.s32.totalorder %v1341, %v1331
      %vm1390 = vcmp.le.s32.totalorder %v1342, %v1331
      %vm1391 = vcmp.le.s32.totalorder %v1341, %v1332
      %vm1392 = vcmp.le.s32.totalorder %v1342, %v1332
      %vm1393 = vcmp.le.s32.totalorder %v1341, %v1333
      %vm1394 = vcmp.le.s32.totalorder %v1342, %v1333
      %vm1395 = vcmp.le.s32.totalorder %v1341, %v1334
      %vm1396 = vcmp.le.s32.totalorder %v1342, %v1334
      %vm1397 = vcmp.le.s32.totalorder %v1341, %v1335
      %vm1398 = vcmp.le.s32.totalorder %v1342, %v1335
      %vm1399 = vcmp.le.s32.totalorder %v1341, %v1336
      %vm1400 = vcmp.le.s32.totalorder %v1342, %v1336
      %vm1401 = vcmp.le.s32.totalorder %v1341, %v1337
      %vm1402 = vcmp.le.s32.totalorder %v1342, %v1337
      %vm1403 = vcmp.le.s32.totalorder %v1341, %v1338
      %vm1404 = vcmp.le.s32.totalorder %v1342, %v1338
      %vm1405 = vcmp.le.s32.totalorder %v1341, %v1339
      %vm1406 = vcmp.le.s32.totalorder %v1342, %v1339
      %v1407 = vsel %vm1343, %v1149, -1e+30
      %v1408 = vsel %vm1344, %v1151, -1e+30
      %v1409 = vsel %vm1345, %v1153, -1e+30
      %v1410 = vsel %vm1346, %v1155, -1e+30
      %v1411 = vsel %vm1347, %v1159, -1e+30
      %v1412 = vsel %vm1348, %v1161, -1e+30
      %v1413 = vsel %vm1349, %v1163, -1e+30
      %v1414 = vsel %vm1350, %v1165, -1e+30
      %v1415 = vsel %vm1351, %v1169, -1e+30
      %v1416 = vsel %vm1352, %v1171, -1e+30
      %v1417 = vsel %vm1353, %v1173, -1e+30
      %v1418 = vsel %vm1354, %v1175, -1e+30
      %v1419 = vsel %vm1355, %v1179, -1e+30
      %v1420 = vsel %vm1356, %v1181, -1e+30
      %v1421 = vsel %vm1357, %v1183, -1e+30
      %v1422 = vsel %vm1358, %v1185, -1e+30
      %v1423 = vsel %vm1359, %v1189, -1e+30
      %v1424 = vsel %vm1360, %v1191, -1e+30
      %v1425 = vsel %vm1361, %v1193, -1e+30
      %v1426 = vsel %vm1362, %v1195, -1e+30
      %v1427 = vsel %vm1363, %v1199, -1e+30
      %v1428 = vsel %vm1364, %v1201, -1e+30
      %v1429 = vsel %vm1365, %v1203, -1e+30
      %v1430 = vsel %vm1366, %v1205, -1e+30
      %v1431 = vsel %vm1367, %v1209, -1e+30
      %v1432 = vsel %vm1368, %v1211, -1e+30
      %v1433 = vsel %vm1369, %v1213, -1e+30
      %v1434 = vsel %vm1370, %v1215, -1e+30
      %v1435 = vsel %vm1371, %v1219, -1e+30
      %v1436 = vsel %vm1372, %v1221, -1e+30
      %v1437 = vsel %vm1373, %v1223, -1e+30
      %v1438 = vsel %vm1374, %v1225, -1e+30
      %v1439 = vsel %vm1375, %v1229, -1e+30
      %v1440 = vsel %vm1376, %v1231, -1e+30
      %v1441 = vsel %vm1377, %v1233, -1e+30
      %v1442 = vsel %vm1378, %v1235, -1e+30
      %v1443 = vsel %vm1379, %v1239, -1e+30
      %v1444 = vsel %vm1380, %v1241, -1e+30
      %v1445 = vsel %vm1381, %v1243, -1e+30
      %v1446 = vsel %vm1382, %v1245, -1e+30
      %v1447 = vsel %vm1383, %v1249, -1e+30
      %v1448 = vsel %vm1384, %v1251, -1e+30
      %v1449 = vsel %vm1385, %v1253, -1e+30
      %v1450 = vsel %vm1386, %v1255, -1e+30
      %v1451 = vsel %vm1387, %v1259, -1e+30
      %v1452 = vsel %vm1388, %v1261, -1e+30
      %v1453 = vsel %vm1389, %v1263, -1e+30
      %v1454 = vsel %vm1390, %v1265, -1e+30
      %v1455 = vsel %vm1391, %v1269, -1e+30
      %v1456 = vsel %vm1392, %v1271, -1e+30
      %v1457 = vsel %vm1393, %v1273, -1e+30
      %v1458 = vsel %vm1394, %v1275, -1e+30
      %v1459 = vsel %vm1395, %v1279, -1e+30
      %v1460 = vsel %vm1396, %v1281, -1e+30
      %v1461 = vsel %vm1397, %v1283, -1e+30
      %v1462 = vsel %vm1398, %v1285, -1e+30
      %v1463 = vsel %vm1399, %v1289, -1e+30
      %v1464 = vsel %vm1400, %v1291, -1e+30
      %v1465 = vsel %vm1401, %v1293, -1e+30
      %v1466 = vsel %vm1402, %v1295, -1e+30
      %v1467 = vsel %vm1403, %v1299, -1e+30
      %v1468 = vsel %vm1404, %v1301, -1e+30
      %v1469 = vsel %vm1405, %v1303, -1e+30
      %v1470 = vsel %vm1406, %v1305, -1e+30
      %v1471 = vmax.f32 %v1407, %v1408
      %1472 = vmax.xlane.f32.xlu0 %v1471
      %v1473 = vpop.xlane.xlu0 %1472
      %v1474 = vmax.f32 %v1409, %v1410
      %1475 = vmax.xlane.f32.xlu0 %v1474
      %v1476 = vpop.xlane.xlu0 %1475
      %v1477 = vmax.f32 %v1411, %v1412
      %1478 = vmax.xlane.f32.xlu0 %v1477
      %v1479 = vpop.xlane.xlu0 %1478
      %v1480 = vmax.f32 %v1413, %v1414
      %1481 = vmax.xlane.f32.xlu0 %v1480
      %v1482 = vpop.xlane.xlu0 %1481
      %v1483 = vmax.f32 %v1415, %v1416
      %1484 = vmax.xlane.f32.xlu0 %v1483
      %v1485 = vpop.xlane.xlu0 %1484
      %v1486 = vmax.f32 %v1417, %v1418
      %1487 = vmax.xlane.f32.xlu0 %v1486
      %v1488 = vpop.xlane.xlu0 %1487
      %v1489 = vmax.f32 %v1419, %v1420
      %1490 = vmax.xlane.f32.xlu0 %v1489
      %v1491 = vpop.xlane.xlu0 %1490
      %v1492 = vmax.f32 %v1421, %v1422
      %1493 = vmax.xlane.f32.xlu0 %v1492
      %v1494 = vpop.xlane.xlu0 %1493
      %v1495 = vmax.f32 %v1423, %v1424
      %1496 = vmax.xlane.f32.xlu0 %v1495
      %v1497 = vpop.xlane.xlu0 %1496
      %v1498 = vmax.f32 %v1425, %v1426
      %1499 = vmax.xlane.f32.xlu0 %v1498
      %v1500 = vpop.xlane.xlu0 %1499
      %v1501 = vmax.f32 %v1427, %v1428
      %1502 = vmax.xlane.f32.xlu0 %v1501
      %v1503 = vpop.xlane.xlu0 %1502
      %v1504 = vmax.f32 %v1429, %v1430
      %1505 = vmax.xlane.f32.xlu0 %v1504
      %v1506 = vpop.xlane.xlu0 %1505
      %v1507 = vmax.f32 %v1431, %v1432
      %1508 = vmax.xlane.f32.xlu0 %v1507
      %v1509 = vpop.xlane.xlu0 %1508
      %v1510 = vmax.f32 %v1433, %v1434
      %1511 = vmax.xlane.f32.xlu0 %v1510
      %v1512 = vpop.xlane.xlu0 %1511
      %v1513 = vmax.f32 %v1435, %v1436
      %1514 = vmax.xlane.f32.xlu0 %v1513
      %v1515 = vpop.xlane.xlu0 %1514
      %v1516 = vmax.f32 %v1437, %v1438
      %1517 = vmax.xlane.f32.xlu0 %v1516
      %v1518 = vpop.xlane.xlu0 %1517
      %v1519 = vmax.f32 %v1439, %v1440
      %1520 = vmax.xlane.f32.xlu0 %v1519
      %v1521 = vpop.xlane.xlu0 %1520
      %v1522 = vmax.f32 %v1441, %v1442
      %1523 = vmax.xlane.f32.xlu0 %v1522
      %v1524 = vpop.xlane.xlu0 %1523
      %v1525 = vmax.f32 %v1443, %v1444
      %1526 = vmax.xlane.f32.xlu0 %v1525
      %v1527 = vpop.xlane.xlu0 %1526
      %v1528 = vmax.f32 %v1445, %v1446
      %1529 = vmax.xlane.f32.xlu0 %v1528
      %v1530 = vpop.xlane.xlu0 %1529
      %v1531 = vmax.f32 %v1447, %v1448
      %1532 = vmax.xlane.f32.xlu0 %v1531
      %v1533 = vpop.xlane.xlu0 %1532
      %v1534 = vmax.f32 %v1449, %v1450
      %1535 = vmax.xlane.f32.xlu0 %v1534
      %v1536 = vpop.xlane.xlu0 %1535
      %v1537 = vmax.f32 %v1451, %v1452
      %1538 = vmax.xlane.f32.xlu0 %v1537
      %v1539 = vpop.xlane.xlu0 %1538
      %v1540 = vmax.f32 %v1453, %v1454
      %1541 = vmax.xlane.f32.xlu0 %v1540
      %v1542 = vpop.xlane.xlu0 %1541
      %v1543 = vmax.f32 %v1455, %v1456
      %1544 = vmax.xlane.f32.xlu0 %v1543
      %v1545 = vpop.xlane.xlu0 %1544
      %v1546 = vmax.f32 %v1457, %v1458
      %1547 = vmax.xlane.f32.xlu0 %v1546
      %v1548 = vpop.xlane.xlu0 %1547
      %v1549 = vmax.f32 %v1459, %v1460
      %1550 = vmax.xlane.f32.xlu0 %v1549
      %v1551 = vpop.xlane.xlu0 %1550
      %v1552 = vmax.f32 %v1461, %v1462
      %1553 = vmax.xlane.f32.xlu0 %v1552
      %v1554 = vpop.xlane.xlu0 %1553
      %v1555 = vmax.f32 %v1463, %v1464
      %1556 = vmax.xlane.f32.xlu0 %v1555
      %v1557 = vpop.xlane.xlu0 %1556
      %v1558 = vmax.f32 %v1465, %v1466
      %1559 = vmax.xlane.f32.xlu0 %v1558
      %v1560 = vpop.xlane.xlu0 %1559
      %v1561 = vmax.f32 %v1467, %v1468
      %1562 = vmax.xlane.f32.xlu0 %v1561
      %v1563 = vpop.xlane.xlu0 %1562
      %v1564 = vmax.f32 %v1469, %v1470
      %1565 = vmax.xlane.f32.xlu0 %v1564
      %v1566 = vpop.xlane.xlu0 %1565
      %v1567 = vsub.f32 %v1407, %v1473
      %v1568 = vsub.f32 %v1408, %v1473
      %v1569 = vsub.f32 %v1409, %v1476
      %v1570 = vsub.f32 %v1410, %v1476
      %v1571 = vsub.f32 %v1411, %v1479
      %v1572 = vsub.f32 %v1412, %v1479
      %v1573 = vsub.f32 %v1413, %v1482
      %v1574 = vsub.f32 %v1414, %v1482
      %v1575 = vsub.f32 %v1415, %v1485
      %v1576 = vsub.f32 %v1416, %v1485
      %v1577 = vsub.f32 %v1417, %v1488
      %v1578 = vsub.f32 %v1418, %v1488
      %v1579 = vsub.f32 %v1419, %v1491
      %v1580 = vsub.f32 %v1420, %v1491
      %v1581 = vsub.f32 %v1421, %v1494
      %v1582 = vsub.f32 %v1422, %v1494
      %v1583 = vsub.f32 %v1423, %v1497
      %v1584 = vsub.f32 %v1424, %v1497
      %v1585 = vsub.f32 %v1425, %v1500
      %v1586 = vsub.f32 %v1426, %v1500
      %v1587 = vsub.f32 %v1427, %v1503
      %v1588 = vsub.f32 %v1428, %v1503
      %v1589 = vsub.f32 %v1429, %v1506
      %v1590 = vsub.f32 %v1430, %v1506
      %v1591 = vsub.f32 %v1431, %v1509
      %v1592 = vsub.f32 %v1432, %v1509
      %v1593 = vsub.f32 %v1433, %v1512
      %v1594 = vsub.f32 %v1434, %v1512
      %v1595 = vsub.f32 %v1435, %v1515
      %v1596 = vsub.f32 %v1436, %v1515
      %v1597 = vsub.f32 %v1437, %v1518
      %v1598 = vsub.f32 %v1438, %v1518
      %v1599 = vsub.f32 %v1439, %v1521
      %v1600 = vsub.f32 %v1440, %v1521
      %v1601 = vsub.f32 %v1441, %v1524
      %v1602 = vsub.f32 %v1442, %v1524
      %v1603 = vsub.f32 %v1443, %v1527
      %v1604 = vsub.f32 %v1444, %v1527
      %v1605 = vsub.f32 %v1445, %v1530
      %v1606 = vsub.f32 %v1446, %v1530
      %v1607 = vsub.f32 %v1447, %v1533
      %v1608 = vsub.f32 %v1448, %v1533
      %v1609 = vsub.f32 %v1449, %v1536
      %v1610 = vsub.f32 %v1450, %v1536
      %v1611 = vsub.f32 %v1451, %v1539
      %v1612 = vsub.f32 %v1452, %v1539
      %v1613 = vsub.f32 %v1453, %v1542
      %v1614 = vsub.f32 %v1454, %v1542
      %v1615 = vsub.f32 %v1455, %v1545
      %v1616 = vsub.f32 %v1456, %v1545
      %v1617 = vsub.f32 %v1457, %v1548
      %v1618 = vsub.f32 %v1458, %v1548
      %v1619 = vsub.f32 %v1459, %v1551
      %v1620 = vsub.f32 %v1460, %v1551
      %v1621 = vsub.f32 %v1461, %v1554
      %v1622 = vsub.f32 %v1462, %v1554
      %v1623 = vsub.f32 %v1463, %v1557
      %v1624 = vsub.f32 %v1464, %v1557
      %v1625 = vsub.f32 %v1465, %v1560
      %v1626 = vsub.f32 %v1466, %v1560
      %v1627 = vsub.f32 %v1467, %v1563
      %v1628 = vsub.f32 %v1468, %v1563
      %v1629 = vsub.f32 %v1469, %v1566
      %v1630 = vsub.f32 %v1470, %v1566
      %v1631 = vmul.f32 %v1567, 1.442695
      %v1632 = vpow.pop %v1631
      %v1633 = vmul.f32 %v1568, 1.442695
      %v1634 = vpow.pop %v1633
      %v1635 = vmul.f32 %v1569, 1.442695
      %v1636 = vpow.pop %v1635
      %v1637 = vmul.f32 %v1570, 1.442695
      %v1638 = vpow.pop %v1637
      %v1639 = vmul.f32 %v1571, 1.442695
      %v1640 = vpow.pop %v1639
      %v1641 = vmul.f32 %v1572, 1.442695
      %v1642 = vpow.pop %v1641
      %v1643 = vmul.f32 %v1573, 1.442695
      %v1644 = vpow.pop %v1643
      %v1645 = vmul.f32 %v1574, 1.442695
      %v1646 = vpow.pop %v1645
      %v1647 = vmul.f32 %v1575, 1.442695
      %v1648 = vpow.pop %v1647
      %v1649 = vmul.f32 %v1576, 1.442695
      %v1650 = vpow.pop %v1649
      %v1651 = vmul.f32 %v1577, 1.442695
      %v1652 = vpow.pop %v1651
      %v1653 = vmul.f32 %v1578, 1.442695
      %v1654 = vpow.pop %v1653
      %v1655 = vmul.f32 %v1579, 1.442695
      %v1656 = vpow.pop %v1655
      %v1657 = vmul.f32 %v1580, 1.442695
      %v1658 = vpow.pop %v1657
      %v1659 = vmul.f32 %v1581, 1.442695
      %v1660 = vpow.pop %v1659
      %v1661 = vmul.f32 %v1582, 1.442695
      %v1662 = vpow.pop %v1661
      %v1663 = vmul.f32 %v1583, 1.442695
      %v1664 = vpow.pop %v1663
      %v1665 = vmul.f32 %v1584, 1.442695
      %v1666 = vpow.pop %v1665
      %v1667 = vmul.f32 %v1585, 1.442695
      %v1668 = vpow.pop %v1667
      %v1669 = vmul.f32 %v1586, 1.442695
      %v1670 = vpow.pop %v1669
      %v1671 = vmul.f32 %v1587, 1.442695
      %v1672 = vpow.pop %v1671
      %v1673 = vmul.f32 %v1588, 1.442695
      %v1674 = vpow.pop %v1673
      %v1675 = vmul.f32 %v1589, 1.442695
      %v1676 = vpow.pop %v1675
      %v1677 = vmul.f32 %v1590, 1.442695
      %v1678 = vpow.pop %v1677
      %v1679 = vmul.f32 %v1591, 1.442695
      %v1680 = vpow.pop %v1679
      %v1681 = vmul.f32 %v1592, 1.442695
      %v1682 = vpow.pop %v1681
      %v1683 = vmul.f32 %v1593, 1.442695
      %v1684 = vpow.pop %v1683
      %v1685 = vmul.f32 %v1594, 1.442695
      %v1686 = vpow.pop %v1685
      %v1687 = vmul.f32 %v1595, 1.442695
      %v1688 = vpow.pop %v1687
      %v1689 = vmul.f32 %v1596, 1.442695
      %v1690 = vpow.pop %v1689
      %v1691 = vmul.f32 %v1597, 1.442695
      %v1692 = vpow.pop %v1691
      %v1693 = vmul.f32 %v1598, 1.442695
      %v1694 = vpow.pop %v1693
      %v1695 = vmul.f32 %v1599, 1.442695
      %v1696 = vpow.pop %v1695
      %v1697 = vmul.f32 %v1600, 1.442695
      %v1698 = vpow.pop %v1697
      %v1699 = vmul.f32 %v1601, 1.442695
      %v1700 = vpow.pop %v1699
      %v1701 = vmul.f32 %v1602, 1.442695
      %v1702 = vpow.pop %v1701
      %v1703 = vmul.f32 %v1603, 1.442695
      %v1704 = vpow.pop %v1703
      %v1705 = vmul.f32 %v1604, 1.442695
      %v1706 = vpow.pop %v1705
      %v1707 = vmul.f32 %v1605, 1.442695
      %v1708 = vpow.pop %v1707
      %v1709 = vmul.f32 %v1606, 1.442695
      %v1710 = vpow.pop %v1709
      %v1711 = vmul.f32 %v1607, 1.442695
      %v1712 = vpow.pop %v1711
      %v1713 = vmul.f32 %v1608, 1.442695
      %v1714 = vpow.pop %v1713
      %v1715 = vmul.f32 %v1609, 1.442695
      %v1716 = vpow.pop %v1715
      %v1717 = vmul.f32 %v1610, 1.442695
      %v1718 = vpow.pop %v1717
      %v1719 = vmul.f32 %v1611, 1.442695
      %v1720 = vpow.pop %v1719
      %v1721 = vmul.f32 %v1612, 1.442695
      %v1722 = vpow.pop %v1721
      %v1723 = vmul.f32 %v1613, 1.442695
      %v1724 = vpow.pop %v1723
      %v1725 = vmul.f32 %v1614, 1.442695
      %v1726 = vpow.pop %v1725
      %v1727 = vmul.f32 %v1615, 1.442695
      %v1728 = vpow.pop %v1727
      %v1729 = vmul.f32 %v1616, 1.442695
      %v1730 = vpow.pop %v1729
      %v1731 = vmul.f32 %v1617, 1.442695
      %v1732 = vpow.pop %v1731
      %v1733 = vmul.f32 %v1618, 1.442695
      %v1734 = vpow.pop %v1733
      %v1735 = vmul.f32 %v1619, 1.442695
      %v1736 = vpow.pop %v1735
      %v1737 = vmul.f32 %v1620, 1.442695
      %v1738 = vpow.pop %v1737
      %v1739 = vmul.f32 %v1621, 1.442695
      %v1740 = vpow.pop %v1739
      %v1741 = vmul.f32 %v1622, 1.442695
      %v1742 = vpow.pop %v1741
      %v1743 = vmul.f32 %v1623, 1.442695
      %v1744 = vpow.pop %v1743
      %v1745 = vmul.f32 %v1624, 1.442695
      %v1746 = vpow.pop %v1745
      %v1747 = vmul.f32 %v1625, 1.442695
      %v1748 = vpow.pop %v1747
      %v1749 = vmul.f32 %v1626, 1.442695
      %v1750 = vpow.pop %v1749
      %v1751 = vmul.f32 %v1627, 1.442695
      %v1752 = vpow.pop %v1751
      %v1753 = vmul.f32 %v1628, 1.442695
      %v1754 = vpow.pop %v1753
      %v1755 = vmul.f32 %v1629, 1.442695
      %v1756 = vpow.pop %v1755
      %v1757 = vmul.f32 %v1630, 1.442695
      %v1758 = vpow.pop %v1757
      %v1759 = vadd.f32 %v1632, %v1634
      %1760 = vadd.xlane.f32.xlu0 %v1759
      %v1761 = vpop.xlane.xlu0 %1760
      %v1762 = vadd.f32 %v1636, %v1638
      %1763 = vadd.xlane.f32.xlu0 %v1762
      %v1764 = vpop.xlane.xlu0 %1763
      %v1765 = vadd.f32 %v1640, %v1642
      %1766 = vadd.xlane.f32.xlu0 %v1765
      %v1767 = vpop.xlane.xlu0 %1766
      %v1768 = vadd.f32 %v1644, %v1646
      %1769 = vadd.xlane.f32.xlu0 %v1768
      %v1770 = vpop.xlane.xlu0 %1769
      %v1771 = vadd.f32 %v1648, %v1650
      %1772 = vadd.xlane.f32.xlu0 %v1771
      %v1773 = vpop.xlane.xlu0 %1772
      %v1774 = vadd.f32 %v1652, %v1654
      %1775 = vadd.xlane.f32.xlu0 %v1774
      %v1776 = vpop.xlane.xlu0 %1775
      %v1777 = vadd.f32 %v1656, %v1658
      %1778 = vadd.xlane.f32.xlu0 %v1777
      %v1779 = vpop.xlane.xlu0 %1778
      %v1780 = vadd.f32 %v1660, %v1662
      %1781 = vadd.xlane.f32.xlu0 %v1780
      %v1782 = vpop.xlane.xlu0 %1781
      %v1783 = vadd.f32 %v1664, %v1666
      %1784 = vadd.xlane.f32.xlu0 %v1783
      %v1785 = vpop.xlane.xlu0 %1784
      %v1786 = vadd.f32 %v1668, %v1670
      %1787 = vadd.xlane.f32.xlu0 %v1786
      %v1788 = vpop.xlane.xlu0 %1787
      %v1789 = vadd.f32 %v1672, %v1674
      %1790 = vadd.xlane.f32.xlu0 %v1789
      %v1791 = vpop.xlane.xlu0 %1790
      %v1792 = vadd.f32 %v1676, %v1678
      %1793 = vadd.xlane.f32.xlu0 %v1792
      %v1794 = vpop.xlane.xlu0 %1793
      %v1795 = vadd.f32 %v1680, %v1682
      %1796 = vadd.xlane.f32.xlu0 %v1795
      %v1797 = vpop.xlane.xlu0 %1796
      %v1798 = vadd.f32 %v1684, %v1686
      %1799 = vadd.xlane.f32.xlu0 %v1798
      %v1800 = vpop.xlane.xlu0 %1799
      %v1801 = vadd.f32 %v1688, %v1690
      %1802 = vadd.xlane.f32.xlu0 %v1801
      %v1803 = vpop.xlane.xlu0 %1802
      %v1804 = vadd.f32 %v1692, %v1694
      %1805 = vadd.xlane.f32.xlu0 %v1804
      %v1806 = vpop.xlane.xlu0 %1805
      %v1807 = vadd.f32 %v1696, %v1698
      %1808 = vadd.xlane.f32.xlu0 %v1807
      %v1809 = vpop.xlane.xlu0 %1808
      %v1810 = vadd.f32 %v1700, %v1702
      %1811 = vadd.xlane.f32.xlu0 %v1810
      %v1812 = vpop.xlane.xlu0 %1811
      %v1813 = vadd.f32 %v1704, %v1706
      %1814 = vadd.xlane.f32.xlu0 %v1813
      %v1815 = vpop.xlane.xlu0 %1814
      %v1816 = vadd.f32 %v1708, %v1710
      %1817 = vadd.xlane.f32.xlu0 %v1816
      %v1818 = vpop.xlane.xlu0 %1817
      %v1819 = vadd.f32 %v1712, %v1714
      %1820 = vadd.xlane.f32.xlu0 %v1819
      %v1821 = vpop.xlane.xlu0 %1820
      %v1822 = vadd.f32 %v1716, %v1718
      %1823 = vadd.xlane.f32.xlu0 %v1822
      %v1824 = vpop.xlane.xlu0 %1823
      %v1825 = vadd.f32 %v1720, %v1722
      %1826 = vadd.xlane.f32.xlu0 %v1825
      %v1827 = vpop.xlane.xlu0 %1826
      %v1828 = vadd.f32 %v1724, %v1726
      %1829 = vadd.xlane.f32.xlu0 %v1828
      %v1830 = vpop.xlane.xlu0 %1829
      %v1831 = vadd.f32 %v1728, %v1730
      %1832 = vadd.xlane.f32.xlu0 %v1831
      %v1833 = vpop.xlane.xlu0 %1832
      %v1834 = vadd.f32 %v1732, %v1734
      %1835 = vadd.xlane.f32.xlu0 %v1834
      %v1836 = vpop.xlane.xlu0 %1835
      %v1837 = vadd.f32 %v1736, %v1738
      %1838 = vadd.xlane.f32.xlu0 %v1837
      %v1839 = vpop.xlane.xlu0 %1838
      %v1840 = vadd.f32 %v1740, %v1742
      %1841 = vadd.xlane.f32.xlu0 %v1840
      %v1842 = vpop.xlane.xlu0 %1841
      %v1843 = vadd.f32 %v1744, %v1746
      %1844 = vadd.xlane.f32.xlu0 %v1843
      %v1845 = vpop.xlane.xlu0 %1844
      %v1846 = vadd.f32 %v1748, %v1750
      %1847 = vadd.xlane.f32.xlu0 %v1846
      %v1848 = vpop.xlane.xlu0 %1847
      %v1849 = vadd.f32 %v1752, %v1754
      %1850 = vadd.xlane.f32.xlu0 %v1849
      %v1851 = vpop.xlane.xlu0 %1850
      %v1852 = vadd.f32 %v1756, %v1758
      %1853 = vadd.xlane.f32.xlu0 %v1852
      %v1854 = vpop.xlane.xlu0 %1853
      %v1855 = vpack.c.bf16 %v1636, %v1632
      %v1856 = vpack.c.bf16 %v1638, %v1634
      %v1857 = vpack.c.bf16 %v1644, %v1640
      %v1858 = vpack.c.bf16 %v1646, %v1642
      %v1859 = vpack.c.bf16 %v1652, %v1648
      %v1860 = vpack.c.bf16 %v1654, %v1650
      %v1861 = vpack.c.bf16 %v1660, %v1656
      %v1862 = vpack.c.bf16 %v1662, %v1658
      %v1863 = vpack.c.bf16 %v1668, %v1664
      %v1864 = vpack.c.bf16 %v1670, %v1666
      %v1865 = vpack.c.bf16 %v1676, %v1672
      %v1866 = vpack.c.bf16 %v1678, %v1674
      %v1867 = vpack.c.bf16 %v1684, %v1680
      %v1868 = vpack.c.bf16 %v1686, %v1682
      %v1869 = vpack.c.bf16 %v1692, %v1688
      %v1870 = vpack.c.bf16 %v1694, %v1690
      %v1871 = vpack.c.bf16 %v1700, %v1696
      %v1872 = vpack.c.bf16 %v1702, %v1698
      %v1873 = vpack.c.bf16 %v1708, %v1704
      %v1874 = vpack.c.bf16 %v1710, %v1706
      %v1875 = vpack.c.bf16 %v1716, %v1712
      %v1876 = vpack.c.bf16 %v1718, %v1714
      %v1877 = vpack.c.bf16 %v1724, %v1720
      %v1878 = vpack.c.bf16 %v1726, %v1722
      %v1879 = vpack.c.bf16 %v1732, %v1728
      %v1880 = vpack.c.bf16 %v1734, %v1730
      %v1881 = vpack.c.bf16 %v1740, %v1736
      %v1882 = vpack.c.bf16 %v1742, %v1738
      %v1883 = vpack.c.bf16 %v1748, %v1744
      %v1884 = vpack.c.bf16 %v1750, %v1746
      %v1885 = vpack.c.bf16 %v1756, %v1752
      %v1886 = vpack.c.bf16 %v1758, %v1754
      %1887 = vrot.lane.b32.xlu0 %v953, 112
      %v1888 = vpop.permute.xlu0 %1887
      %1889 = vrot.lane.b32.xlu0 %v954, 112
      %v1890 = vpop.permute.xlu0 %1889
      %1891 = vrot.lane.b32.xlu0 %v955, 112
      %v1892 = vpop.permute.xlu0 %1891
      %1893 = vrot.lane.b32.xlu0 %v956, 112
      %v1894 = vpop.permute.xlu0 %1893
      %1895 = vrot.lane.b32.xlu0 %v957, 112
      %v1896 = vpop.permute.xlu0 %1895
      %1897 = vrot.lane.b32.xlu0 %v958, 112
      %v1898 = vpop.permute.xlu0 %1897
      %1899 = vrot.lane.b32.xlu0 %v959, 112
      %v1900 = vpop.permute.xlu0 %1899
      %1901 = vrot.lane.b32.xlu0 %v960, 112
      %v1902 = vpop.permute.xlu0 %1901
      %1903 = vrot.lane.b32.xlu0 %v961, 112
      %v1904 = vpop.permute.xlu0 %1903
      %1905 = vrot.lane.b32.xlu0 %v962, 112
      %v1906 = vpop.permute.xlu0 %1905
      %1907 = vrot.lane.b32.xlu0 %v963, 112
      %v1908 = vpop.permute.xlu0 %1907
      %1909 = vrot.lane.b32.xlu0 %v964, 112
      %v1910 = vpop.permute.xlu0 %1909
      %1911 = vrot.lane.b32.xlu0 %v965, 112
      %v1912 = vpop.permute.xlu0 %1911
      %1913 = vrot.lane.b32.xlu0 %v966, 112
      %v1914 = vpop.permute.xlu0 %1913
      %1915 = vrot.lane.b32.xlu0 %v967, 112
      %v1916 = vpop.permute.xlu0 %1915
      %1917 = vrot.lane.b32.xlu0 %v968, 112
      %v1918 = vpop.permute.xlu0 %1917
      %1935 = vmatprep.subr.bf16.mxu0 0
      %1936 = vmatpush1.bf16.msra.mxu0 %v1888
      %1937 = vmatprep.subr.bf16.mxu0 0
      %1938 = vmatpush1.bf16.msra.mxu0 %v1890
      %1939 = vmatprep.subr.bf16.mxu0 0
      %1940 = vmatpush1.bf16.msra.mxu0 %v1892
      %1941 = vmatprep.subr.bf16.mxu0 0
      %1942 = vmatpush1.bf16.msra.mxu0 %v1894
      %1943 = vmatprep.subr.bf16.mxu0 0
      %1944 = vmatpush1.bf16.msra.mxu0 %v1896
      %1945 = vmatprep.subr.bf16.mxu0 0
      %1946 = vmatpush1.bf16.msra.mxu0 %v1898
      %1947 = vmatprep.subr.bf16.mxu0 0
      %1948 = vmatpush1.bf16.msra.mxu0 %v1900
      %1949 = vmatprep.subr.bf16.mxu0 0
      %1950 = vmatpush1.bf16.msra.mxu0 %v1902
      %1951 = vmatprep.subr.bf16.mxu0 0
      %1952 = vmatpush1.bf16.msra.mxu0 %v1904
      %1953 = vmatprep.subr.bf16.mxu0 0
      %1954 = vmatpush1.bf16.msra.mxu0 %v1906
      %1955 = vmatprep.subr.bf16.mxu0 0
      %1956 = vmatpush1.bf16.msra.mxu0 %v1908
      %1957 = vmatprep.subr.bf16.mxu0 0
      %1958 = vmatpush1.bf16.msra.mxu0 %v1910
      %1959 = vmatprep.subr.bf16.mxu0 0
      %1960 = vmatpush1.bf16.msra.mxu0 %v1912
      %1961 = vmatprep.subr.bf16.mxu0 0
      %1962 = vmatpush1.bf16.msra.mxu0 %v1914
      %1963 = vmatprep.subr.bf16.mxu0 0
      %1964 = vmatpush1.bf16.msra.mxu0 %v1916
      %1965 = vmatprep.subr.bf16.mxu0 0
      %1966 = vmatpush1.bf16.msra.mxu0 %v1918
      %1967 = vmatprep.mubr.bf16.mxu0 %v1856
      %1968 = vmatmul.mubr.bf16.gmra.mrb[0].mxu0 %v1855
      %v1969 = vpop.f32.mrb[0].mxu0
      %v1970 = vadd.f32 0.0, %v1969
      %v1971 = vpop.f32.mrb[0].mxu0
      %v1972 = vpop.f32.mrb[0].mxu0
      %v1973 = vadd.f32 0.0, %v1972
      %v1974 = vpop.f32.mrb[0].mxu0
      %1975 = vmatprep.mubr.bf16.mxu0 %v1858
      %1976 = vmatmul.mubr.bf16.gmra.mrb[0].mxu0 %v1857
      %v1977 = vpop.f32.mrb[0].mxu0
      %v1978 = vadd.f32 0.0, %v1977
      %v1979 = vpop.f32.mrb[0].mxu0
      %v1980 = vpop.f32.mrb[0].mxu0
      %v1981 = vadd.f32 0.0, %v1980
      %v1982 = vpop.f32.mrb[0].mxu0
      %1983 = vmatprep.mubr.bf16.mxu0 %v1860
      %1984 = vmatmul.mubr.bf16.gmra.mrb[0].mxu0 %v1859
      %v1985 = vpop.f32.mrb[0].mxu0
      %v1986 = vadd.f32 0.0, %v1985
      %v1987 = vpop.f32.mrb[0].mxu0
      %v1988 = vpop.f32.mrb[0].mxu0
      %v1989 = vadd.f32 0.0, %v1988
      %v1990 = vpop.f32.mrb[0].mxu0
      %1991 = vmatprep.mubr.bf16.mxu0 %v1862
      %1992 = vmatmul.mubr.bf16.gmra.mrb[0].mxu0 %v1861
      %v1993 = vpop.f32.mrb[0].mxu0
      %v1994 = vadd.f32 0.0, %v1993
      %v1995 = vpop.f32.mrb[0].mxu0
      %v1996 = vpop.f32.mrb[0].mxu0
      %v1997 = vadd.f32 0.0, %v1996
      %v1998 = vpop.f32.mrb[0].mxu0
      %1999 = vmatprep.mubr.bf16.mxu0 %v1864
      %2000 = vmatmul.mubr.bf16.gmra.mrb[0].mxu0 %v1863
      %v2001 = vpop.f32.mrb[0].mxu0
      %v2002 = vadd.f32 0.0, %v2001
      %v2003 = vpop.f32.mrb[0].mxu0
      %v2004 = vpop.f32.mrb[0].mxu0
      %v2005 = vadd.f32 0.0, %v2004
      %v2006 = vpop.f32.mrb[0].mxu0
      %2007 = vmatprep.mubr.bf16.mxu0 %v1866
      %2008 = vmatmul.mubr.bf16.gmra.mrb[0].mxu0 %v1865
      %v2009 = vpop.f32.mrb[0].mxu0
      %v2010 = vadd.f32 0.0, %v2009
      %v2011 = vpop.f32.mrb[0].mxu0
      %v2012 = vpop.f32.mrb[0].mxu0
      %v2013 = vadd.f32 0.0, %v2012
      %v2014 = vpop.f32.mrb[0].mxu0
      %2015 = vmatprep.mubr.bf16.mxu0 %v1868
      %2016 = vmatmul.mubr.bf16.gmra.mrb[0].mxu0 %v1867
      %v2017 = vpop.f32.mrb[0].mxu0
      %v2018 = vadd.f32 0.0, %v2017
      %v2019 = vpop.f32.mrb[0].mxu0
      %v2020 = vpop.f32.mrb[0].mxu0
      %v2021 = vadd.f32 0.0, %v2020
      %v2022 = vpop.f32.mrb[0].mxu0
      %2023 = vmatprep.mubr.bf16.mxu0 %v1870
      %2024 = vmatmul.mubr.bf16.gmra.mrb[0].mxu0 %v1869
      %v2025 = vpop.f32.mrb[0].mxu0
      %v2026 = vadd.f32 0.0, %v2025
      %v2027 = vpop.f32.mrb[0].mxu0
      %v2028 = vpop.f32.mrb[0].mxu0
      %v2029 = vadd.f32 0.0, %v2028
      %v2030 = vpop.f32.mrb[0].mxu0
      %2031 = vmatprep.mubr.bf16.mxu0 %v1872
      %2032 = vmatmul.mubr.bf16.gmra.mrb[0].mxu0 %v1871
      %v2033 = vpop.f32.mrb[0].mxu0
      %v2034 = vadd.f32 0.0, %v2033
      %v2035 = vpop.f32.mrb[0].mxu0
      %v2036 = vpop.f32.mrb[0].mxu0
      %v2037 = vadd.f32 0.0, %v2036
      %v2038 = vpop.f32.mrb[0].mxu0
      %2039 = vmatprep.mubr.bf16.mxu0 %v1874
      %2040 = vmatmul.mubr.bf16.gmra.mrb[0].mxu0 %v1873
      %v2041 = vpop.f32.mrb[0].mxu0
      %v2042 = vadd.f32 0.0, %v2041
      %v2043 = vpop.f32.mrb[0].mxu0
      %v2044 = vpop.f32.mrb[0].mxu0
      %v2045 = vadd.f32 0.0, %v2044
      %v2046 = vpop.f32.mrb[0].mxu0
      %2047 = vmatprep.mubr.bf16.mxu0 %v1876
      %2048 = vmatmul.mubr.bf16.gmra.mrb[0].mxu0 %v1875
      %v2049 = vpop.f32.mrb[0].mxu0
      %v2050 = vadd.f32 0.0, %v2049
      %v2051 = vpop.f32.mrb[0].mxu0
      %v2052 = vpop.f32.mrb[0].mxu0
      %v2053 = vadd.f32 0.0, %v2052
      %v2054 = vpop.f32.mrb[0].mxu0
      %2055 = vmatprep.mubr.bf16.mxu0 %v1878
      %2056 = vmatmul.mubr.bf16.gmra.mrb[0].mxu0 %v1877
      %v2057 = vpop.f32.mrb[0].mxu0
      %v2058 = vadd.f32 0.0, %v2057
      %v2059 = vpop.f32.mrb[0].mxu0
      %v2060 = vpop.f32.mrb[0].mxu0
      %v2061 = vadd.f32 0.0, %v2060
      %v2062 = vpop.f32.mrb[0].mxu0
      %2063 = vmatprep.mubr.bf16.mxu0 %v1880
      %2064 = vmatmul.mubr.bf16.gmra.mrb[0].mxu0 %v1879
      %v2065 = vpop.f32.mrb[0].mxu0
      %v2066 = vadd.f32 0.0, %v2065
      %v2067 = vpop.f32.mrb[0].mxu0
      %v2068 = vpop.f32.mrb[0].mxu0
      %v2069 = vadd.f32 0.0, %v2068
      %v2070 = vpop.f32.mrb[0].mxu0
      %2071 = vmatprep.mubr.bf16.mxu0 %v1882
      %2072 = vmatmul.mubr.bf16.gmra.mrb[0].mxu0 %v1881
      %v2073 = vpop.f32.mrb[0].mxu0
      %v2074 = vadd.f32 0.0, %v2073
      %v2075 = vpop.f32.mrb[0].mxu0
      %v2076 = vpop.f32.mrb[0].mxu0
      %v2077 = vadd.f32 0.0, %v2076
      %v2078 = vpop.f32.mrb[0].mxu0
      %2079 = vmatprep.mubr.bf16.mxu0 %v1884
      %2080 = vmatmul.mubr.bf16.gmra.mrb[0].mxu0 %v1883
      %v2081 = vpop.f32.mrb[0].mxu0
      %v2082 = vadd.f32 0.0, %v2081
      %v2083 = vpop.f32.mrb[0].mxu0
      %v2084 = vpop.f32.mrb[0].mxu0
      %v2085 = vadd.f32 0.0, %v2084
      %v2086 = vpop.f32.mrb[0].mxu0
      %2087 = vmatprep.mubr.bf16.mxu0 %v1886
      %2088 = vmatmul.mubr.bf16.gmra.mrb[0].mxu0 %v1885
      %v2089 = vpop.f32.mrb[0].mxu0
      %v2090 = vadd.f32 0.0, %v2089
      %v2091 = vpop.f32.mrb[0].mxu0
      %v2092 = vpop.f32.mrb[0].mxu0
      %v2093 = vadd.f32 0.0, %v2092
      %v2094 = vpop.f32.mrb[0].mxu0
      %2095 = vdwg.mxu0
      %v2096 = vld [vmem:[#allocation2] sm:$0xff]
      %v2097 = vld [vmem:[#allocation2 + $0x8] sm:$0xff]
      %v2098 = vld [vmem:[#allocation2 + $0x10] sm:$0xff]
      %v2099 = vld [vmem:[#allocation2 + $0x18] sm:$0xff]
      %v2100 = vld [vmem:[#allocation2 + $0x20] sm:$0xff]
      %v2101 = vld [vmem:[#allocation2 + $0x28] sm:$0xff]
      %v2102 = vld [vmem:[#allocation2 + $0x30] sm:$0xff]
      %v2103 = vld [vmem:[#allocation2 + $0x38] sm:$0xff]
      %v2104 = vld [vmem:[#allocation2 + $0x40] sm:$0xff]
      %v2105 = vld [vmem:[#allocation2 + $0x48] sm:$0xff]
      %v2106 = vld [vmem:[#allocation2 + $0x50] sm:$0xff]
      %v2107 = vld [vmem:[#allocation2 + $0x58] sm:$0xff]
      %v2108 = vld [vmem:[#allocation2 + $0x60] sm:$0xff]
      %v2109 = vld [vmem:[#allocation2 + $0x68] sm:$0xff]
      %v2110 = vld [vmem:[#allocation2 + $0x70] sm:$0xff]
      %v2111 = vld [vmem:[#allocation2 + $0x78] sm:$0xff]
      %v2112 = vld [vmem:[#allocation2 + $0x80] sm:$0xff]
      %v2113 = vld [vmem:[#allocation2 + $0x88] sm:$0xff]
      %v2114 = vld [vmem:[#allocation2 + $0x90] sm:$0xff]
      %v2115 = vld [vmem:[#allocation2 + $0x98] sm:$0xff]
      %v2116 = vld [vmem:[#allocation2 + $0xa0] sm:$0xff]
      %v2117 = vld [vmem:[#allocation2 + $0xa8] sm:$0xff]
      %v2118 = vld [vmem:[#allocation2 + $0xb0] sm:$0xff]
      %v2119 = vld [vmem:[#allocation2 + $0xb8] sm:$0xff]
      %v2120 = vld [vmem:[#allocation2 + $0xc0] sm:$0xff]
      %v2121 = vld [vmem:[#allocation2 + $0xc8] sm:$0xff]
      %v2122 = vld [vmem:[#allocation2 + $0xd0] sm:$0xff]
      %v2123 = vld [vmem:[#allocation2 + $0xd8] sm:$0xff]
      %v2124 = vld [vmem:[#allocation2 + $0xe0] sm:$0xff]
      %v2125 = vld [vmem:[#allocation2 + $0xe8] sm:$0xff]
      %v2126 = vld [vmem:[#allocation2 + $0xf0] sm:$0xff]
      %v2127 = vld [vmem:[#allocation2 + $0xf8] sm:$0xff]
      %v2128 = vrcp.pop %v1761
      %v2129 = vrcp.pop %v1764
      %v2130 = vrcp.pop %v1767
      %v2131 = vrcp.pop %v1770
      %v2132 = vrcp.pop %v1773
      %v2133 = vrcp.pop %v1776
      %v2134 = vrcp.pop %v1779
      %v2135 = vrcp.pop %v1782
      %v2136 = vrcp.pop %v1785
      %v2137 = vrcp.pop %v1788
      %v2138 = vrcp.pop %v1791
      %v2139 = vrcp.pop %v1794
      %v2140 = vrcp.pop %v1797
      %v2141 = vrcp.pop %v1800
      %v2142 = vrcp.pop %v1803
      %v2143 = vrcp.pop %v1806
      %v2144 = vrcp.pop %v1809
      %v2145 = vrcp.pop %v1812
      %v2146 = vrcp.pop %v1815
      %v2147 = vrcp.pop %v1818
      %v2148 = vrcp.pop %v1821
      %v2149 = vrcp.pop %v1824
      %v2150 = vrcp.pop %v1827
      %v2151 = vrcp.pop %v1830
      %v2152 = vrcp.pop %v1833
      %v2153 = vrcp.pop %v1836
      %v2154 = vrcp.pop %v1839
      %v2155 = vrcp.pop %v1842
      %v2156 = vrcp.pop %v1845
      %v2157 = vrcp.pop %v1848
      %v2158 = vrcp.pop %v1851
      %v2159 = vrcp.pop %v1854
      %v2160 = vmul.f32 %v1970, %v2128
      %v2161 = vmul.f32 %v1973, %v2129
      %v2162 = vmul.f32 %v1978, %v2130
      %v2163 = vmul.f32 %v1981, %v2131
      %v2164 = vmul.f32 %v1986, %v2132
      %v2165 = vmul.f32 %v1989, %v2133
      %v2166 = vmul.f32 %v1994, %v2134
      %v2167 = vmul.f32 %v1997, %v2135
      %v2168 = vmul.f32 %v2002, %v2136
      %v2169 = vmul.f32 %v2005, %v2137
      %v2170 = vmul.f32 %v2010, %v2138
      %v2171 = vmul.f32 %v2013, %v2139
      %v2172 = vmul.f32 %v2018, %v2140
      %v2173 = vmul.f32 %v2021, %v2141
      %v2174 = vmul.f32 %v2026, %v2142
      %v2175 = vmul.f32 %v2029, %v2143
      %v2176 = vmul.f32 %v2034, %v2144
      %v2177 = vmul.f32 %v2037, %v2145
      %v2178 = vmul.f32 %v2042, %v2146
      %v2179 = vmul.f32 %v2045, %v2147
      %v2180 = vmul.f32 %v2050, %v2148
      %v2181 = vmul.f32 %v2053, %v2149
      %v2182 = vmul.f32 %v2058, %v2150
      %v2183 = vmul.f32 %v2061, %v2151
      %v2184 = vmul.f32 %v2066, %v2152
      %v2185 = vmul.f32 %v2069, %v2153
      %v2186 = vmul.f32 %v2074, %v2154
      %v2187 = vmul.f32 %v2077, %v2155
      %v2188 = vmul.f32 %v2082, %v2156
      %v2189 = vmul.f32 %v2085, %v2157
      %v2190 = vmul.f32 %v2090, %v2158
      %v2191 = vmul.f32 %v2093, %v2159
      %v2192 = vadd.f32 %v2096, %v2160
      %v2193 = vadd.f32 %v2097, %v2161
      %v2194 = vadd.f32 %v2098, %v2162
      %v2195 = vadd.f32 %v2099, %v2163
      %v2196 = vadd.f32 %v2100, %v2164
      %v2197 = vadd.f32 %v2101, %v2165
      %v2198 = vadd.f32 %v2102, %v2166
      %v2199 = vadd.f32 %v2103, %v2167
      %v2200 = vadd.f32 %v2104, %v2168
      %v2201 = vadd.f32 %v2105, %v2169
      %v2202 = vadd.f32 %v2106, %v2170
      %v2203 = vadd.f32 %v2107, %v2171
      %v2204 = vadd.f32 %v2108, %v2172
      %v2205 = vadd.f32 %v2109, %v2173
      %v2206 = vadd.f32 %v2110, %v2174
      %v2207 = vadd.f32 %v2111, %v2175
      %v2208 = vadd.f32 %v2112, %v2176
      %v2209 = vadd.f32 %v2113, %v2177
      %v2210 = vadd.f32 %v2114, %v2178
      %v2211 = vadd.f32 %v2115, %v2179
      %v2212 = vadd.f32 %v2116, %v2180
      %v2213 = vadd.f32 %v2117, %v2181
      %v2214 = vadd.f32 %v2118, %v2182
      %v2215 = vadd.f32 %v2119, %v2183
      %v2216 = vadd.f32 %v2120, %v2184
      %v2217 = vadd.f32 %v2121, %v2185
      %v2218 = vadd.f32 %v2122, %v2186
      %v2219 = vadd.f32 %v2123, %v2187
      %v2220 = vadd.f32 %v2124, %v2188
      %v2221 = vadd.f32 %v2125, %v2189
      %v2222 = vadd.f32 %v2126, %v2190
      %v2223 = vadd.f32 %v2127, %v2191
      %2224 = vst.msk [vmem:[#allocation2] sm:$0xff] %vm406, %v2192
      %2225 = vst.msk [vmem:[#allocation2 + $0x8] sm:$0xff] %vm406, %v2193
      %2226 = vst.msk [vmem:[#allocation2 + $0x10] sm:$0xff] %vm406, %v2194
      %2227 = vst.msk [vmem:[#allocation2 + $0x18] sm:$0xff] %vm406, %v2195
      %2228 = vst.msk [vmem:[#allocation2 + $0x20] sm:$0xff] %vm406, %v2196
      %2229 = vst.msk [vmem:[#allocation2 + $0x28] sm:$0xff] %vm406, %v2197
      %2230 = vst.msk [vmem:[#allocation2 + $0x30] sm:$0xff] %vm406, %v2198
      %2231 = vst.msk [vmem:[#allocation2 + $0x38] sm:$0xff] %vm406, %v2199
      %2232 = vst.msk [vmem:[#allocation2 + $0x40] sm:$0xff] %vm406, %v2200
      %2233 = vst.msk [vmem:[#allocation2 + $0x48] sm:$0xff] %vm406, %v2201
      %2234 = vst.msk [vmem:[#allocation2 + $0x50] sm:$0xff] %vm406, %v2202
      %2235 = vst.msk [vmem:[#allocation2 + $0x58] sm:$0xff] %vm406, %v2203
      %2236 = vst.msk [vmem:[#allocation2 + $0x60] sm:$0xff] %vm406, %v2204
      %2237 = vst.msk [vmem:[#allocation2 + $0x68] sm:$0xff] %vm406, %v2205
      %2238 = vst.msk [vmem:[#allocation2 + $0x70] sm:$0xff] %vm406, %v2206
      %2239 = vst.msk [vmem:[#allocation2 + $0x78] sm:$0xff] %vm406, %v2207
      %2240 = vst.msk [vmem:[#allocation2 + $0x80] sm:$0xff] %vm406, %v2208
      %2241 = vst.msk [vmem:[#allocation2 + $0x88] sm:$0xff] %vm406, %v2209
      %2242 = vst.msk [vmem:[#allocation2 + $0x90] sm:$0xff] %vm406, %v2210
      %2243 = vst.msk [vmem:[#allocation2 + $0x98] sm:$0xff] %vm406, %v2211
      %2244 = vst.msk [vmem:[#allocation2 + $0xa0] sm:$0xff] %vm406, %v2212
      %2245 = vst.msk [vmem:[#allocation2 + $0xa8] sm:$0xff] %vm406, %v2213
      %2246 = vst.msk [vmem:[#allocation2 + $0xb0] sm:$0xff] %vm406, %v2214
      %2247 = vst.msk [vmem:[#allocation2 + $0xb8] sm:$0xff] %vm406, %v2215
      %2248 = vst.msk [vmem:[#allocation2 + $0xc0] sm:$0xff] %vm406, %v2216
      %2249 = vst.msk [vmem:[#allocation2 + $0xc8] sm:$0xff] %vm406, %v2217
      %2250 = vst.msk [vmem:[#allocation2 + $0xd0] sm:$0xff] %vm406, %v2218
      %2251 = vst.msk [vmem:[#allocation2 + $0xd8] sm:$0xff] %vm406, %v2219
      %2252 = vst.msk [vmem:[#allocation2 + $0xe0] sm:$0xff] %vm406, %v2220
      %2253 = vst.msk [vmem:[#allocation2 + $0xe8] sm:$0xff] %vm406, %v2221
      %2254 = vst.msk [vmem:[#allocation2 + $0xf0] sm:$0xff] %vm406, %v2222
      %2255 = vst.msk [vmem:[#allocation2 + $0xf8] sm:$0xff] %vm406, %v2223
      %p2256 = scmp.eq.s32.totalorder %s22, 3
      // Predicated region
      $region49: #{tpu_custom_call.1} parent=43 // pred_check
        %p2257 = pneg %p2256
      $region50: #{tpu_custom_call.1} parent=43 // pred_check_branch
        %2259 = sbr.rel (%p2257) target = $region52
      $region51: #{tpu_custom_call.1} parent=43 // pred_region
        %v2260 = vld [vmem:[#allocation2] sm:$0xff]
        %v2261 = vld [vmem:[#allocation2 + $0x8] sm:$0xff]
        %v2262 = vld [vmem:[#allocation2 + $0x10] sm:$0xff]
        %v2263 = vld [vmem:[#allocation2 + $0x18] sm:$0xff]
        %v2264 = vld [vmem:[#allocation2 + $0x20] sm:$0xff]
        %v2265 = vld [vmem:[#allocation2 + $0x28] sm:$0xff]
        %v2266 = vld [vmem:[#allocation2 + $0x30] sm:$0xff]
        %v2267 = vld [vmem:[#allocation2 + $0x38] sm:$0xff]
        %v2268 = vld [vmem:[#allocation2 + $0x40] sm:$0xff]
        %v2269 = vld [vmem:[#allocation2 + $0x48] sm:$0xff]
        %v2270 = vld [vmem:[#allocation2 + $0x50] sm:$0xff]
        %v2271 = vld [vmem:[#allocation2 + $0x58] sm:$0xff]
        %v2272 = vld [vmem:[#allocation2 + $0x60] sm:$0xff]
        %v2273 = vld [vmem:[#allocation2 + $0x68] sm:$0xff]
        %v2274 = vld [vmem:[#allocation2 + $0x70] sm:$0xff]
        %v2275 = vld [vmem:[#allocation2 + $0x78] sm:$0xff]
        %v2276 = vld [vmem:[#allocation2 + $0x80] sm:$0xff]
        %v2277 = vld [vmem:[#allocation2 + $0x88] sm:$0xff]
        %v2278 = vld [vmem:[#allocation2 + $0x90] sm:$0xff]
        %v2279 = vld [vmem:[#allocation2 + $0x98] sm:$0xff]
        %v2280 = vld [vmem:[#allocation2 + $0xa0] sm:$0xff]
        %v2281 = vld [vmem:[#allocation2 + $0xa8] sm:$0xff]
        %v2282 = vld [vmem:[#allocation2 + $0xb0] sm:$0xff]
        %v2283 = vld [vmem:[#allocation2 + $0xb8] sm:$0xff]
        %v2284 = vld [vmem:[#allocation2 + $0xc0] sm:$0xff]
        %v2285 = vld [vmem:[#allocation2 + $0xc8] sm:$0xff]
        %v2286 = vld [vmem:[#allocation2 + $0xd0] sm:$0xff]
        %v2287 = vld [vmem:[#allocation2 + $0xd8] sm:$0xff]
        %v2288 = vld [vmem:[#allocation2 + $0xe0] sm:$0xff]
        %v2289 = vld [vmem:[#allocation2 + $0xe8] sm:$0xff]
        %v2290 = vld [vmem:[#allocation2 + $0xf0] sm:$0xff]
        %v2291 = vld [vmem:[#allocation2 + $0xf8] sm:$0xff]
        %v2292 = vld [vmem:[%s5] sm:$0x1]
        %v2294 = vlaneseq
        %v2295 = vshrl.u32 %v2294, 7
        %v2296 = vsub.s32 0, %v2295
        %v2297 = vrot.slane %v2292, %v2296
        %v2299 = vadd.f32 %v2260, %v2297
        %v2300 = vadd.f32 %v2261, %v2297
        %v2301 = vadd.f32 %v2262, %v2297
        %v2302 = vadd.f32 %v2263, %v2297
        %v2303 = vadd.f32 %v2264, %v2297
        %v2304 = vadd.f32 %v2265, %v2297
        %v2305 = vadd.f32 %v2266, %v2297
        %v2306 = vadd.f32 %v2267, %v2297
        %v2307 = vadd.f32 %v2268, %v2297
        %v2308 = vadd.f32 %v2269, %v2297
        %v2309 = vadd.f32 %v2270, %v2297
        %v2310 = vadd.f32 %v2271, %v2297
        %v2311 = vadd.f32 %v2272, %v2297
        %v2312 = vadd.f32 %v2273, %v2297
        %v2313 = vadd.f32 %v2274, %v2297
        %v2314 = vadd.f32 %v2275, %v2297
        %v2315 = vadd.f32 %v2276, %v2297
        %v2316 = vadd.f32 %v2277, %v2297
        %v2317 = vadd.f32 %v2278, %v2297
        %v2318 = vadd.f32 %v2279, %v2297
        %v2319 = vadd.f32 %v2280, %v2297
        %v2320 = vadd.f32 %v2281, %v2297
        %v2321 = vadd.f32 %v2282, %v2297
        %v2322 = vadd.f32 %v2283, %v2297
        %v2323 = vadd.f32 %v2284, %v2297
        %v2324 = vadd.f32 %v2285, %v2297
        %v2325 = vadd.f32 %v2286, %v2297
        %v2326 = vadd.f32 %v2287, %v2297
        %v2327 = vadd.f32 %v2288, %v2297
        %v2328 = vadd.f32 %v2289, %v2297
        %v2329 = vadd.f32 %v2290, %v2297
        %v2330 = vadd.f32 %v2291, %v2297
        %2331 = vst.msk [vmem:[%s303] sm:$0xff] %vm406, %v2299
        %2332 = vst.msk [vmem:[%s303 + $0x8] sm:$0xff] %vm406, %v2300
        %2333 = vst.msk [vmem:[%s303 + $0x10] sm:$0xff] %vm406, %v2301
        %2334 = vst.msk [vmem:[%s303 + $0x18] sm:$0xff] %vm406, %v2302
        %2335 = vst.msk [vmem:[%s303 + $0x20] sm:$0xff] %vm406, %v2303
        %2336 = vst.msk [vmem:[%s303 + $0x28] sm:$0xff] %vm406, %v2304
        %2337 = vst.msk [vmem:[%s303 + $0x30] sm:$0xff] %vm406, %v2305
        %2338 = vst.msk [vmem:[%s303 + $0x38] sm:$0xff] %vm406, %v2306
        %2339 = vst.msk [vmem:[%s303 + $0x40] sm:$0xff] %vm406, %v2307
        %2340 = vst.msk [vmem:[%s303 + $0x48] sm:$0xff] %vm406, %v2308
        %2341 = vst.msk [vmem:[%s303 + $0x50] sm:$0xff] %vm406, %v2309
        %2342 = vst.msk [vmem:[%s303 + $0x58] sm:$0xff] %vm406, %v2310
        %2343 = vst.msk [vmem:[%s303 + $0x60] sm:$0xff] %vm406, %v2311
        %2344 = vst.msk [vmem:[%s303 + $0x68] sm:$0xff] %vm406, %v2312
        %2345 = vst.msk [vmem:[%s303 + $0x70] sm:$0xff] %vm406, %v2313
        %2346 = vst.msk [vmem:[%s303 + $0x78] sm:$0xff] %vm406, %v2314
        %2347 = vst.msk [vmem:[%s303 + $0x80] sm:$0xff] %vm406, %v2315
        %2348 = vst.msk [vmem:[%s303 + $0x88] sm:$0xff] %vm406, %v2316
        %2349 = vst.msk [vmem:[%s303 + $0x90] sm:$0xff] %vm406, %v2317
        %2350 = vst.msk [vmem:[%s303 + $0x98] sm:$0xff] %vm406, %v2318
        %2351 = vst.msk [vmem:[%s303 + $0xa0] sm:$0xff] %vm406, %v2319
        %2352 = vst.msk [vmem:[%s303 + $0xa8] sm:$0xff] %vm406, %v2320
        %2353 = vst.msk [vmem:[%s303 + $0xb0] sm:$0xff] %vm406, %v2321
        %2354 = vst.msk [vmem:[%s303 + $0xb8] sm:$0xff] %vm406, %v2322
        %2355 = vst.msk [vmem:[%s303 + $0xc0] sm:$0xff] %vm406, %v2323
        %2356 = vst.msk [vmem:[%s303 + $0xc8] sm:$0xff] %vm406, %v2324
        %2357 = vst.msk [vmem:[%s303 + $0xd0] sm:$0xff] %vm406, %v2325
        %2358 = vst.msk [vmem:[%s303 + $0xd8] sm:$0xff] %vm406, %v2326
        %2359 = vst.msk [vmem:[%s303 + $0xe0] sm:$0xff] %vm406, %v2327
        %2360 = vst.msk [vmem:[%s303 + $0xe8] sm:$0xff] %vm406, %v2328
        %2361 = vst.msk [vmem:[%s303 + $0xf0] sm:$0xff] %vm406, %v2329
        %2362 = vst.msk [vmem:[%s303 + $0xf8] sm:$0xff] %vm406, %v2330
      $region52: #{tpu_custom_call.1} parent=43 // pred_fallthru
        _
      %p2363 = scmp.lt.s32.totalorder %s21, 1
      %s2364 = scalar_select %p2363, %s21, 1
      %s2365 = smul.addr %s2364, 32
      %s2366 = smul.addr %s2365, 8
      %s2367 = scalar_lea.vmem %s6, %s2366
      // Predicated region
      $region53: #{tpu_custom_call.1} parent=43 // pred_check
        %p2368 = pneg %p188
      $region54: #{tpu_custom_call.1} parent=43 // pred_check_branch
        %2370 = sbr.rel (%p2368) target = $region56
      $region55: #{tpu_custom_call.1} parent=43 // pred_region
        _
      $region56: #{tpu_custom_call.1} parent=43 // pred_fallthru
        _
    $region44: #{tpu_custom_call.1} parent=5 // pred_fallthru
      _
    %p2371 = scmp.le.s32.totalorder 2, %s12
    // Predicated region
    $region57: #{tpu_custom_call.1} parent=5 // pred_check
      %p2372 = pneg %p2371
    $region58: #{tpu_custom_call.1} parent=5 // pred_check_branch
      %2374 = sbr.rel (%p2372) target = $region60
    $region59: #{tpu_custom_call.1} parent=5 // pred_region
      %s2375 = ssub.s32 %s12, 2
      // Predicated region
      $region61: #{tpu_custom_call.1} parent=59 // pred_check
        %p2376 = pneg %p194
      $region62: #{tpu_custom_call.1} parent=59 // pred_check_branch
        %2378 = sbr.rel (%p2376) target = $region64
      $region63: #{tpu_custom_call.1} parent=59 // pred_region
        %p2379 = scmp.lt.s32.totalorder %s23, 1
        %s2380 = scalar_select %p2379, %s23, 1
        %s2381 = smul.addr %s2380, 32
        %s2382 = smul.addr %s2381, 8
        %s2383 = scalar_lea.vmem %s6, %s2382
      $region64: #{tpu_custom_call.1} parent=59 // pred_fallthru
        _
    $region60: #{tpu_custom_call.1} parent=5 // pred_fallthru
      _
  $region6: #{tpu_custom_call.1} parent=0 // loop_footer
    %s16 = sadd.s32 1, %s12
  $region7: #{tpu_custom_call.1} parent=0 // loop_footer_branch
    %11 = sbr.rel target = $region3
  $region8: #{tpu_custom_call.1} parent=0 // loop_exit
    _

</llo_original>
